<compile_context>
chip_gen: v5e
topology: v5e:2x2
jax: 0.10.0
libtpu: 0.0.40
codegen_flags: <defaults>
</compile_context>

<pallas_src>
import jax
import jax.numpy as jnp
from jax import lax
from jax.experimental import pallas as pl
from jax.experimental.pallas import tpu as pltpu


def _round_up(x, m):
    return ((x + m - 1) // m) * m


def _cdiv(a, b):
    return (a + b - 1) // b


def _choose_tiling(n_rows, in_channels, hidden, tile_m):
    """Pick (row_tile, padded_rows).

    Large tiles amortize the ~0.35us per-grid-step overhead; keep >= 2 grid
    steps when there is enough work so the 'parallel' axis can be split across
    the two v7x TensorCores, round the tile to a multiple of 256 rows for clean
    (8,128) tiling and lane-dense output stores, and cap the tile by a per-row
    VMEM budget (double-buffered f32 inputs + f32/bf16 intermediates).
    """
    # Approximate VMEM bytes per row of tile:
    #   2 inputs x 2 buffers x Cin x 4B (f32)  +  ~3 live (tm, H) intermediates.
    bytes_per_row = 16 * in_channels + 12 * hidden + 64
    tm_cap = max(256, (((24 << 20) // bytes_per_row) // 256) * 256)
    tile_m = min(tile_m, tm_cap)

    n_steps = _cdiv(n_rows, tile_m)
    if n_rows > 256:
        n_steps = max(n_steps, 2)          # let megacore split the grid
    tm = _round_up(_cdiv(n_rows, n_steps), 256)
    tm = min(tm, _round_up(tile_m, 256))
    n_padded = _round_up(n_rows, tm)
    return tm, n_padded


def _linkpred_kernel(xi_ref, xj_ref,
                     w1_ref, b1_ref,
                     w2_ref, b2_ref,
                     w3t_ref, b3_ref,
                     o_ref):
    f32 = jnp.float32
    bf16 = jnp.bfloat16

    # Hadamard of the two node embeddings, in f32 (native input dtype, and v5e
    # has no bf16 VALU).  Only the MXU operand is narrowed to bf16.
    x = (xi_ref[...].astype(f32) * xj_ref[...].astype(f32)).astype(bf16)

    # lin0 -> relu   (bf16 MXU matmul, f32 accumulate).  dropout(eval) omitted.
    h = jnp.dot(x, w1_ref[...], preferred_element_type=f32) + b1_ref[...]
    h = jnp.maximum(h, 0.0).astype(bf16)

    # lin1 -> relu
    h = jnp.dot(h, w2_ref[...], preferred_element_type=f32) + b2_ref[...]
    h = jnp.maximum(h, 0.0).astype(bf16)

    # lin2 -> sigmoid, computed transposed:
    #   (out_pad, H) contracted with (tile_m, H) on H  ->  (out_pad, tile_m)
    # so the epilogue and the output store are lane-dense (last dim = tile_m).
    zt = lax.dot_general(
        w3t_ref[...], h,
        dimension_numbers=(((1,), (1,)), ((), ())),
        preferred_element_type=f32)
    cout = o_ref.shape[0]                       # static block dim
    z = zt[:cout, :] + b3_ref[...]              # (cout, tile_m) + (cout, 1)
    o_ref[...] = jax.nn.sigmoid(z).astype(o_ref.dtype)


def link_predictor_forward(x_i, x_j, params, *, tile_m=4096):
    """Fused LinkPredictor forward.

    x_i, x_j : [N, in_channels] float32 edge-endpoint embeddings.
    params   : ((w1, b1), (w2, b2), (w3, b3)) with weights stored as
               (in_features, out_features), i.e. torch weight transposed.
    Returns  : [N, out_channels] float32 probabilities.
    """
    (w1, b1), (w2, b2), (w3, b3) = params
    N, Cin = x_i.shape
    H = w1.shape[1]
    Cout = w3.shape[1]

    tm, Np = _choose_tiling(N, Cin, H, tile_m)
    grid = (Np // tm,)

    bf16, f32 = jnp.bfloat16, jnp.float32

    # Stream node features in their native (f32) dtype; pad rows only if needed.
    xi = x_i
    xj = x_j
    if Np != N:
        pad = ((0, Np - N), (0, 0))
        xi = jnp.pad(xi, pad)
        xj = jnp.pad(xj, pad)

    # Resident weights in bf16 (tiny; loaded once).  Final layer is applied
    # transposed; pad its row count to the sublane granularity (8) with zero
    # rows (sliced off inside the kernel).
    w1b = w1.astype(bf16)
    w2b = w2.astype(bf16)
    R3 = _round_up(Cout, 8)
    w3t = jnp.pad(w3.T, ((0, R3 - Cout), (0, 0))).astype(bf16)
    b1r = b1.reshape(1, H).astype(f32)
    b2r = b2.reshape(1, H).astype(f32)
    b3r = b3.reshape(Cout, 1).astype(f32)

    in_bytes = xi.dtype.itemsize
    row_spec = pl.BlockSpec((tm, Cin), lambda i: (i, 0))
    resident = lambda shape: pl.BlockSpec(shape, lambda i: (0, 0))

    # Scoped VMEM: double-buffered input tiles + f32 output tile, resident
    # weights, plus headroom for in-kernel f32/bf16 intermediates.
    vmem_est = (
        2 * 2 * tm * Cin * in_bytes             # x_i, x_j tiles (2 bufs each)
        + 2 * Cout * tm * 4                     # output tile (2 bufs, f32)
        + (Cin * H + H * H + R3 * H) * 2        # resident bf16 weights
        + (2 * H + Cout) * 4                    # biases
        + 12 * tm * max(Cin, H)                 # in-kernel intermediates
        + (4 << 20))                            # slack
    vmem_limit = min(48 << 20, max(32 << 20, int(vmem_est)))

    out_t = pl.pallas_call(
        _linkpred_kernel,
        out_shape=jax.ShapeDtypeStruct((Cout, Np), f32),
        grid_spec=pltpu.PrefetchScalarGridSpec(
            num_scalar_prefetch=0,
            grid=grid,
            in_specs=[
                row_spec,                  # x_i tile
                row_spec,                  # x_j tile
                resident((Cin, H)),        # w1 (resident across grid)
                resident((1, H)),          # b1
                resident((H, H)),          # w2
                resident((1, H)),          # b2
                resident((R3, H)),         # w3 transposed + row-padded
                resident((Cout, 1)),       # b3
            ],
            out_specs=pl.BlockSpec((Cout, tm), lambda i: (0, i)),
        ),
        compiler_params=pltpu.CompilerParams(
            dimension_semantics=("parallel",),
            vmem_limit_bytes=vmem_limit,
        ),
    )(xi, xj, w1b, b1r, w2b, b2r, w3t, b3r)

    # (Cout, Np) -> (N, Cout); padded rows are dropped here.
    return out_t.T[:N]


def init_params(key, in_channels, hidden_channels, out_channels):
    """Deterministic synthetic weights (same shapes as the torch Linear layers,
    stored as (in_features, out_features) = torch weight transposed)."""
    ks = jax.random.split(key, 6)

    def linear(kw, kb, fan_in, fan_out):
        bound = 1.0 / jnp.sqrt(fan_in)           # torch Linear default-init style
        w = jax.random.uniform(kw, (fan_in, fan_out), jnp.float32, -bound, bound)
        b = jax.random.uniform(kb, (fan_out,), jnp.float32, -bound, bound)
        return w, b

    l0 = linear(ks[0], ks[1], in_channels, hidden_channels)
    l1 = linear(ks[2], ks[3], hidden_channels, hidden_channels)
    l2 = linear(ks[4], ks[5], hidden_channels, out_channels)
    return (l0, l1, l2)


def reference_forward_f32(x_i, x_j, params):
    """Pure f32 reference matching the torch module (inference)."""
    (w1, b1), (w2, b2), (w3, b3) = params
    x = x_i * x_j
    x = jnp.maximum(x @ w1 + b1, 0.0)
    x = jnp.maximum(x @ w2 + b2, 0.0)
    return jax.nn.sigmoid(x @ w3 + b3)


def reference_forward_bf16(x_i, x_j, params):
    """Reference mirroring the kernel's f32-product / bf16-MXU / f32-acc recipe."""
    (w1, b1), (w2, b2), (w3, b3) = params
    bf16, f32 = jnp.bfloat16, jnp.float32
    x = (x_i.astype(f32) * x_j.astype(f32)).astype(bf16)
    h = jnp.dot(x, w1.astype(bf16), preferred_element_type=f32) + b1
    h = jnp.maximum(h, 0.0).astype(bf16)
    h = jnp.dot(h, w2.astype(bf16), preferred_element_type=f32) + b2
    h = jnp.maximum(h, 0.0).astype(bf16)
    z = jnp.dot(h, w3.astype(bf16), preferred_element_type=f32) + b3
    return jax.nn.sigmoid(z)


if __name__ == "__main__":
    # Small shapes consistent with the module (num_layers=3, out_channels=1).
    # N is deliberately not a multiple of the tile to exercise padding/slicing.
    N, IN_C, HID_C, OUT_C = 2000, 32, 64, 1

    key = jax.random.PRNGKey(0)
    k_xi, k_xj, k_p = jax.random.split(key, 3)

    x_i = jax.random.normal(k_xi, (N, IN_C), jnp.float32)
    x_j = jax.random.normal(k_xj, (N, IN_C), jnp.float32)
    params = init_params(k_p, IN_C, HID_C, OUT_C)

    out = link_predictor_forward(x_i, x_j, params)
    out = jax.block_until_ready(out)
    assert out.shape == (N, OUT_C)

    ref_bf16 = reference_forward_bf16(x_i, x_j, params)
    ref_f32 = reference_forward_f32(x_i, x_j, params)
    assert jnp.allclose(out, ref_bf16, atol=2e-3, rtol=2e-3), (
        "mismatch vs bf16-mirrored reference, max abs diff "
        f"{jnp.max(jnp.abs(out - ref_bf16)):.3e}")
    assert jnp.allclose(out, ref_f32, atol=5e-2, rtol=5e-2), (
        "mismatch vs f32 reference, max abs diff "
        f"{jnp.max(jnp.abs(out - ref_f32)):.3e}")

    print("KERNEL_OK")
</pallas_src>

<mosaic_0001>
module attributes {stable_mosaic.version = 11 : i64} {
  func.func @_linkpred_kernel(%arg0: i32, %arg1: memref<1024x32xf32, #tpu.memory_space<vmem>>, %arg2: memref<1024x32xf32, #tpu.memory_space<vmem>>, %arg3: memref<32x64xbf16, #tpu.memory_space<vmem>>, %arg4: memref<1x64xf32, #tpu.memory_space<vmem>>, %arg5: memref<64x64xbf16, #tpu.memory_space<vmem>>, %arg6: memref<1x64xf32, #tpu.memory_space<vmem>>, %arg7: memref<8x64xbf16, #tpu.memory_space<vmem>>, %arg8: memref<1x1xf32, #tpu.memory_space<vmem>>, %arg9: memref<1x1024xf32, #tpu.memory_space<vmem>>) attributes {dimension_semantics = [#tpu.dimension_semantics<parallel>], iteration_bounds = array<i64: 2>, scalar_prefetch = 0 : i64, scratch_operands = 0 : i64, tpu.core_type = #tpu.core_type<tc>, window_params = [{transform_indices = @transform_0, window_bounds = array<i64: 1024, 32>}, {transform_indices = @transform_1, window_bounds = array<i64: 1024, 32>}, {pipeline_mode = #tpu.pipeline_mode<synchronous>, transform_indices = @transform_2, window_bounds = array<i64: 32, 64>}, {pipeline_mode = #tpu.pipeline_mode<synchronous>, transform_indices = @transform_3, window_bounds = array<i64: 1, 64>}, {pipeline_mode = #tpu.pipeline_mode<synchronous>, transform_indices = @transform_4, window_bounds = array<i64: 64, 64>}, {pipeline_mode = #tpu.pipeline_mode<synchronous>, transform_indices = @transform_5, window_bounds = array<i64: 1, 64>}, {pipeline_mode = #tpu.pipeline_mode<synchronous>, transform_indices = @transform_6, window_bounds = array<i64: 8, 64>}, {pipeline_mode = #tpu.pipeline_mode<synchronous>, transform_indices = @transform_7, window_bounds = array<i64: 1, 1>}, {transform_indices = @transform_8, window_bounds = array<i64: 1, 1024>}]} {
    %c0 = arith.constant 0 : index
    %c0_0 = arith.constant 0 : index
    %0 = vector.load %arg1[%c0, %c0_0] : memref<1024x32xf32, #tpu.memory_space<vmem>>, vector<1024x32xf32>
    %c0_1 = arith.constant 0 : index
    %c0_2 = arith.constant 0 : index
    %1 = vector.load %arg2[%c0_1, %c0_2] : memref<1024x32xf32, #tpu.memory_space<vmem>>, vector<1024x32xf32>
    %2 = arith.mulf %0, %1 : vector<1024x32xf32>
    %3 = arith.truncf %2 : vector<1024x32xf32> to vector<1024x32xbf16>
    %c0_3 = arith.constant 0 : index
    %c0_4 = arith.constant 0 : index
    %4 = vector.load %arg3[%c0_3, %c0_4] : memref<32x64xbf16, #tpu.memory_space<vmem>>, vector<32x64xbf16>
    %cst = arith.constant dense<0.000000e+00> : vector<1024x64xf32>
    %5 = tpu.matmul %3, %4, %cst {dimension_numbers = #tpu.dot_dimension_numbers<[1], [0], [0], [1], [0, 0, 1, 1], [], []>} : vector<1024x32xbf16>, vector<32x64xbf16>, vector<1024x64xf32> -> vector<1024x64xf32>
    %c0_5 = arith.constant 0 : index
    %c0_6 = arith.constant 0 : index
    %6 = vector.load %arg4[%c0_5, %c0_6] : memref<1x64xf32, #tpu.memory_space<vmem>>, vector<1x64xf32>
    %7 = vector.broadcast %6 : vector<1x64xf32> to vector<1024x64xf32>
    %8 = arith.addf %5, %7 : vector<1024x64xf32>
    %cst_7 = arith.constant 0.000000e+00 : f32
    %9 = vector.broadcast %cst_7 : f32 to vector<1024x64xf32>
    %10 = arith.maximumf %8, %9 : vector<1024x64xf32>
    %11 = arith.truncf %10 : vector<1024x64xf32> to vector<1024x64xbf16>
    %c0_8 = arith.constant 0 : index
    %c0_9 = arith.constant 0 : index
    %12 = vector.load %arg5[%c0_8, %c0_9] : memref<64x64xbf16, #tpu.memory_space<vmem>>, vector<64x64xbf16>
    %cst_10 = arith.constant dense<0.000000e+00> : vector<1024x64xf32>
    %13 = tpu.matmul %11, %12, %cst_10 {dimension_numbers = #tpu.dot_dimension_numbers<[1], [0], [0], [1], [0, 0, 1, 1], [], []>} : vector<1024x64xbf16>, vector<64x64xbf16>, vector<1024x64xf32> -> vector<1024x64xf32>
    %c0_11 = arith.constant 0 : index
    %c0_12 = arith.constant 0 : index
    %14 = vector.load %arg6[%c0_11, %c0_12] : memref<1x64xf32, #tpu.memory_space<vmem>>, vector<1x64xf32>
    %15 = vector.broadcast %14 : vector<1x64xf32> to vector<1024x64xf32>
    %16 = arith.addf %13, %15 : vector<1024x64xf32>
    %cst_13 = arith.constant 0.000000e+00 : f32
    %17 = vector.broadcast %cst_13 : f32 to vector<1024x64xf32>
    %18 = arith.maximumf %16, %17 : vector<1024x64xf32>
    %19 = arith.truncf %18 : vector<1024x64xf32> to vector<1024x64xbf16>
    %c0_14 = arith.constant 0 : index
    %c0_15 = arith.constant 0 : index
    %20 = vector.load %arg7[%c0_14, %c0_15] : memref<8x64xbf16, #tpu.memory_space<vmem>>, vector<8x64xbf16>
    %cst_16 = arith.constant dense<0.000000e+00> : vector<8x1024xf32>
    %21 = tpu.matmul %20, %19, %cst_16 {dimension_numbers = #tpu.dot_dimension_numbers<[1], [1], [0], [0], [0, 0, 1, 0], [], []>} : vector<8x64xbf16>, vector<1024x64xbf16>, vector<8x1024xf32> -> vector<8x1024xf32>
    %22 = vector.extract_strided_slice %21 {offsets = [0, 0], sizes = [1, 1024], strides = [1, 1]} : vector<8x1024xf32> to vector<1x1024xf32>
    %c0_17 = arith.constant 0 : index
    %c0_18 = arith.constant 0 : index
    %23 = vector.load %arg8[%c0_17, %c0_18] : memref<1x1xf32, #tpu.memory_space<vmem>>, vector<1x1xf32>
    %24 = vector.broadcast %23 : vector<1x1xf32> to vector<1x1024xf32>
    %25 = arith.addf %22, %24 : vector<1x1024xf32>
    %26 = arith.negf %25 : vector<1x1024xf32>
    %27 = math.exp %26 : vector<1x1024xf32>
    %cst_19 = arith.constant 1.000000e+00 : f32
    %28 = vector.broadcast %cst_19 : f32 to vector<1x1024xf32>
    %29 = arith.addf %28, %27 : vector<1x1024xf32>
    %30 = arith.divf %28, %29 : vector<1x1024xf32>
    %c0_20 = arith.constant 0 : index
    %c0_21 = arith.constant 0 : index
    %31 = vector.load %arg9[%c0_20, %c0_21] : memref<1x1024xf32, #tpu.memory_space<vmem>>, vector<1x1024xf32>
    tpu.vector_store %arg9[%c0_20, %c0_21], %30 {strides = array<i32>} : memref<1x1024xf32, #tpu.memory_space<vmem>>, vector<1x1024xf32>,
    return
  }
  func.func @transform_0(%arg0: i32) -> (i32, i32) {
    %c0_i32 = arith.constant 0 : i32
    %c0_i32_0 = arith.constant 0 : i32
    return %arg0, %c0_i32 : i32, i32
  }
  func.func @transform_1(%arg0: i32) -> (i32, i32) {
    %c0_i32 = arith.constant 0 : i32
    %c0_i32_0 = arith.constant 0 : i32
    return %arg0, %c0_i32 : i32, i32
  }
  func.func @transform_2(%arg0: i32) -> (i32, i32) {
    %c0_i32 = arith.constant 0 : i32
    %c0_i32_0 = arith.constant 0 : i32
    %c0_i32_1 = arith.constant 0 : i32
    return %c0_i32, %c0_i32_0 : i32, i32
  }
  func.func @transform_3(%arg0: i32) -> (i32, i32) {
    %c0_i32 = arith.constant 0 : i32
    %c0_i32_0 = arith.constant 0 : i32
    %c0_i32_1 = arith.constant 0 : i32
    return %c0_i32, %c0_i32_0 : i32, i32
  }
  func.func @transform_4(%arg0: i32) -> (i32, i32) {
    %c0_i32 = arith.constant 0 : i32
    %c0_i32_0 = arith.constant 0 : i32
    %c0_i32_1 = arith.constant 0 : i32
    return %c0_i32, %c0_i32_0 : i32, i32
  }
  func.func @transform_5(%arg0: i32) -> (i32, i32) {
    %c0_i32 = arith.constant 0 : i32
    %c0_i32_0 = arith.constant 0 : i32
    %c0_i32_1 = arith.constant 0 : i32
    return %c0_i32, %c0_i32_0 : i32, i32
  }
  func.func @transform_6(%arg0: i32) -> (i32, i32) {
    %c0_i32 = arith.constant 0 : i32
    %c0_i32_0 = arith.constant 0 : i32
    %c0_i32_1 = arith.constant 0 : i32
    return %c0_i32, %c0_i32_0 : i32, i32
  }
  func.func @transform_7(%arg0: i32) -> (i32, i32) {
    %c0_i32 = arith.constant 0 : i32
    %c0_i32_0 = arith.constant 0 : i32
    %c0_i32_1 = arith.constant 0 : i32
    return %c0_i32, %c0_i32_0 : i32, i32
  }
  func.func @transform_8(%arg0: i32) -> (i32, i32) {
    %c0_i32 = arith.constant 0 : i32
    %c0_i32_0 = arith.constant 0 : i32
    return %c0_i32, %arg0 : i32, i32
  }
}

</mosaic_0001>

<llo_original>
// kernel: tpu_custom_call.1
$region0: #{tpu_custom_call.1}
  #allocation0 [shape = 'u32[]', space=smem, size = 0x4, offset = 0x4, fixed_abs, tag = 'smem constant byte address 0x4 - core index']
  #allocation1 [shape = 'u32[72,128]{1,0:T(1,128)}', space=vmem, size = 0x9000, scoped, tag = 'internal scratch']
  #allocation2 [shape = 'f32[1,1]{1,0:T(1,128)S(1)}', space=vmem, size = 0x200, scoped, tag = 'scoped memory for tpu_custom_call.1']
  %s0 = inlined_call_operand.vmem [shape: f32[2048,32], index: 0, kind: input, shape index: {}]
  %s1 = inlined_call_operand.vmem [shape: f32[2048,32], index: 1, kind: input, shape index: {}]
  %s2 = inlined_call_operand.vmem [shape: bf16[32,64], index: 2, kind: input, shape index: {}]
  %s3 = inlined_call_operand.vmem [shape: f32[1,64], index: 3, kind: input, shape index: {}]
  %s4 = inlined_call_operand.vmem [shape: bf16[64,64], index: 4, kind: input, shape index: {}]
  %s5 = inlined_call_operand.vmem [shape: f32[1,64], index: 5, kind: input, shape index: {}]
  %s6 = inlined_call_operand.vmem [shape: bf16[8,64], index: 6, kind: input, shape index: {}]
  %s7 = inlined_call_operand.<no memory space> [shape: f32[1,1], index: 7, kind: input, shape index: {}]
  %s8 = inlined_call_operand.hbm [shape: f32[1,2048], index: 8, kind: output, shape index: {}]
  %s9 = sld [smem:[#allocation0]]
  $region65: #{tpu_custom_call.1} parent=0
    _
  %s11 = ssub.s32 1, %s9
  %s12 = scalar_select 0, %s11, %s9
  %v13 = vstv %s7
  %14 = vst [vmem:[#allocation2] sm:$0x1] %v13
  $region1: #{tpu_custom_call.1} parent=0
    #allocation3 [shape = 'u8[8192]{0}', space=vmem, size = 0x2000, scoped, tag = 'output window, operand 0']
    #allocation4 [shape = 's32[2]{0}', space=sflag, size = 0x8, scoped, tag = 'scoped memory for tpu_custom_call.1']
    %15 = vsyncpa [#allocation4], 0
    %s16 = scalar_lea.sflag [#allocation4], 1
    %17 = vsyncpa %s16, 0
    loop: start=0, step=1, limit=4
    $region2: #{tpu_custom_call.1} parent=1 // loop_pre_header
      _
    $region3: #{tpu_custom_call.1} parent=1 // loop_header
      %s19 = sphi 0, %s23
      %p20 = scmp.ge.s32.totalorder %s19, 4
      %s29 = sphi 0, %s31
      %s32 = sphi 0, %s29
      %s33 = sphi 0, %s32
      %s49 = sphi 0, %s33
      %s55 = sphi 0, %s57
      %s58 = sphi 0, %s55
      %s59 = sphi 0, %s58
      %s75 = sphi 0, %s59
      %s79 = sphi 0, %s79
      %s81 = sphi 0, %s79
      %s82 = sphi 0, %s81
      %s96 = sphi 0, %s82
      %s100 = sphi 0, %s100
      %s102 = sphi 0, %s100
      %s103 = sphi 0, %s102
      %s117 = sphi 0, %s103
      %s121 = sphi 0, %s121
      %s123 = sphi 0, %s121
      %s124 = sphi 0, %s123
      %s138 = sphi 0, %s124
      %s142 = sphi 0, %s142
      %s144 = sphi 0, %s142
      %s145 = sphi 0, %s144
      %s159 = sphi 0, %s145
      %s163 = sphi 0, %s163
      %s165 = sphi 0, %s163
      %s166 = sphi 0, %s165
      %s180 = sphi 0, %s166
      %s184 = sphi 0, %s184
      %s186 = sphi 0, %s184
      %s187 = sphi 0, %s186
      %s201 = sphi 0, %s187
      %s207 = sphi 0, %s209
      %s210 = sphi 0, %s207
      %s211 = sphi 0, %s210
      %s227 = sphi 0, %s211
    $region4: #{tpu_custom_call.1} parent=1 // loop_header_branch
      %22 = sbr.rel (%p20) target = $region8
    $region5: #{tpu_custom_call.1} parent=1 // loop_body
      %s24 = ssub.s32 %s19, 1
      %s25 = ssub.s32 %s19, 2
      %s26 = sadd.s32 %s19, 1
      %s27 = ssub.s32 %s19, %s26
      %p28 = scmp.eq.s32.totalorder %s27, 0
      %s30 = sadd.s32 %s29, 1
      %s31 = scalar_select %p28, %s29, %s30
      %p34 = pneg %p28
      %p35 = scmp.eq.s32.totalorder %s19, 1
      %p36 = por %p34, %p35
      %p37 = scmp.ne.s32.totalorder %s29, %s32
      %p38 = scmp.eq.s32.totalorder %s19, 0
      %p39 = por %p37, %p38
      %p40 = scmp.ne.s32.totalorder %s29, %s32
      %p41 = scmp.eq.s32.totalorder %s24, 1
      %p42 = por %p40, %p41
      %p43 = scmp.ne.s32.totalorder %s32, %s33
      %p44 = scmp.eq.s32.totalorder %s24, 0
      %p45 = por %p43, %p44
      %p46 = scmp.ne.s32.totalorder %s32, %s33
      %p47 = scmp.eq.s32.totalorder %s25, 1
      %p48 = por %p46, %p47
      %p50 = scmp.ne.s32.totalorder %s33, %s49
      %p51 = scmp.eq.s32.totalorder %s25, 0
      %p52 = por %p50, %p51
      %s53 = ssub.s32 %s19, %s26
      %p54 = scmp.eq.s32.totalorder %s53, 0
      %s56 = sadd.s32 %s55, 1
      %s57 = scalar_select %p54, %s55, %s56
      %p60 = pneg %p54
      %p61 = scmp.eq.s32.totalorder %s19, 1
      %p62 = por %p60, %p61
      %p63 = scmp.ne.s32.totalorder %s55, %s58
      %p64 = scmp.eq.s32.totalorder %s19, 0
      %p65 = por %p63, %p64
      %p66 = scmp.ne.s32.totalorder %s55, %s58
      %p67 = scmp.eq.s32.totalorder %s24, 1
      %p68 = por %p66, %p67
      %p69 = scmp.ne.s32.totalorder %s58, %s59
      %p70 = scmp.eq.s32.totalorder %s24, 0
      %p71 = por %p69, %p70
      %p72 = scmp.ne.s32.totalorder %s58, %s59
      %p73 = scmp.eq.s32.totalorder %s25, 1
      %p74 = por %p72, %p73
      %p76 = scmp.ne.s32.totalorder %s59, %s75
      %p77 = scmp.eq.s32.totalorder %s25, 0
      %p78 = por %p76, %p77
      %s80 = sadd.s32 %s79, 1
      %p83 = scmp.eq.s32.totalorder %s19, 1
      %p84 = scmp.ne.s32.totalorder %s79, %s81
      %p85 = scmp.eq.s32.totalorder %s19, 0
      %p86 = por %p84, %p85
      %p87 = scmp.ne.s32.totalorder %s79, %s81
      %p88 = scmp.eq.s32.totalorder %s24, 1
      %p89 = por %p87, %p88
      %p90 = scmp.ne.s32.totalorder %s81, %s82
      %p91 = scmp.eq.s32.totalorder %s24, 0
      %p92 = por %p90, %p91
      %p93 = scmp.ne.s32.totalorder %s81, %s82
      %p94 = scmp.eq.s32.totalorder %s25, 1
      %p95 = por %p93, %p94
      %p97 = scmp.ne.s32.totalorder %s82, %s96
      %p98 = scmp.eq.s32.totalorder %s25, 0
      %p99 = por %p97, %p98
      %s101 = sadd.s32 %s100, 1
      %p104 = scmp.eq.s32.totalorder %s19, 1
      %p105 = scmp.ne.s32.totalorder %s100, %s102
      %p106 = scmp.eq.s32.totalorder %s19, 0
      %p107 = por %p105, %p106
      %p108 = scmp.ne.s32.totalorder %s100, %s102
      %p109 = scmp.eq.s32.totalorder %s24, 1
      %p110 = por %p108, %p109
      %p111 = scmp.ne.s32.totalorder %s102, %s103
      %p112 = scmp.eq.s32.totalorder %s24, 0
      %p113 = por %p111, %p112
      %p114 = scmp.ne.s32.totalorder %s102, %s103
      %p115 = scmp.eq.s32.totalorder %s25, 1
      %p116 = por %p114, %p115
      %p118 = scmp.ne.s32.totalorder %s103, %s117
      %p119 = scmp.eq.s32.totalorder %s25, 0
      %p120 = por %p118, %p119
      %s122 = sadd.s32 %s121, 1
      %p125 = scmp.eq.s32.totalorder %s19, 1
      %p126 = scmp.ne.s32.totalorder %s121, %s123
      %p127 = scmp.eq.s32.totalorder %s19, 0
      %p128 = por %p126, %p127
      %p129 = scmp.ne.s32.totalorder %s121, %s123
      %p130 = scmp.eq.s32.totalorder %s24, 1
      %p131 = por %p129, %p130
      %p132 = scmp.ne.s32.totalorder %s123, %s124
      %p133 = scmp.eq.s32.totalorder %s24, 0
      %p134 = por %p132, %p133
      %p135 = scmp.ne.s32.totalorder %s123, %s124
      %p136 = scmp.eq.s32.totalorder %s25, 1
      %p137 = por %p135, %p136
      %p139 = scmp.ne.s32.totalorder %s124, %s138
      %p140 = scmp.eq.s32.totalorder %s25, 0
      %p141 = por %p139, %p140
      %s143 = sadd.s32 %s142, 1
      %p146 = scmp.eq.s32.totalorder %s19, 1
      %p147 = scmp.ne.s32.totalorder %s142, %s144
      %p148 = scmp.eq.s32.totalorder %s19, 0
      %p149 = por %p147, %p148
      %p150 = scmp.ne.s32.totalorder %s142, %s144
      %p151 = scmp.eq.s32.totalorder %s24, 1
      %p152 = por %p150, %p151
      %p153 = scmp.ne.s32.totalorder %s144, %s145
      %p154 = scmp.eq.s32.totalorder %s24, 0
      %p155 = por %p153, %p154
      %p156 = scmp.ne.s32.totalorder %s144, %s145
      %p157 = scmp.eq.s32.totalorder %s25, 1
      %p158 = por %p156, %p157
      %p160 = scmp.ne.s32.totalorder %s145, %s159
      %p161 = scmp.eq.s32.totalorder %s25, 0
      %p162 = por %p160, %p161
      %s164 = sadd.s32 %s163, 1
      %p167 = scmp.eq.s32.totalorder %s19, 1
      %p168 = scmp.ne.s32.totalorder %s163, %s165
      %p169 = scmp.eq.s32.totalorder %s19, 0
      %p170 = por %p168, %p169
      %p171 = scmp.ne.s32.totalorder %s163, %s165
      %p172 = scmp.eq.s32.totalorder %s24, 1
      %p173 = por %p171, %p172
      %p174 = scmp.ne.s32.totalorder %s165, %s166
      %p175 = scmp.eq.s32.totalorder %s24, 0
      %p176 = por %p174, %p175
      %p177 = scmp.ne.s32.totalorder %s165, %s166
      %p178 = scmp.eq.s32.totalorder %s25, 1
      %p179 = por %p177, %p178
      %p181 = scmp.ne.s32.totalorder %s166, %s180
      %p182 = scmp.eq.s32.totalorder %s25, 0
      %p183 = por %p181, %p182
      %s185 = sadd.s32 %s184, 1
      %p188 = scmp.eq.s32.totalorder %s19, 1
      %p189 = scmp.ne.s32.totalorder %s184, %s186
      %p190 = scmp.eq.s32.totalorder %s19, 0
      %p191 = por %p189, %p190
      %p192 = scmp.ne.s32.totalorder %s184, %s186
      %p193 = scmp.eq.s32.totalorder %s24, 1
      %p194 = por %p192, %p193
      %p195 = scmp.ne.s32.totalorder %s186, %s187
      %p196 = scmp.eq.s32.totalorder %s24, 0
      %p197 = por %p195, %p196
      %p198 = scmp.ne.s32.totalorder %s186, %s187
      %p199 = scmp.eq.s32.totalorder %s25, 1
      %p200 = por %p198, %p199
      %p202 = scmp.ne.s32.totalorder %s187, %s201
      %p203 = scmp.eq.s32.totalorder %s25, 0
      %p204 = por %p202, %p203
      %s205 = ssub.s32 %s19, %s26
      %p206 = scmp.eq.s32.totalorder %s205, 0
      %s208 = sadd.s32 %s207, 1
      %s209 = scalar_select %p206, %s207, %s208
      %p212 = pneg %p206
      %p213 = scmp.eq.s32.totalorder %s19, 1
      %p214 = por %p212, %p213
      %p215 = scmp.ne.s32.totalorder %s207, %s210
      %p216 = scmp.eq.s32.totalorder %s19, 0
      %p217 = por %p215, %p216
      %p218 = scmp.ne.s32.totalorder %s207, %s210
      %p219 = scmp.eq.s32.totalorder %s24, 1
      %p220 = por %p218, %p219
      %p221 = scmp.ne.s32.totalorder %s210, %s211
      %p222 = scmp.eq.s32.totalorder %s24, 0
      %p223 = por %p221, %p222
      %p224 = scmp.ne.s32.totalorder %s210, %s211
      %p225 = scmp.eq.s32.totalorder %s25, 1
      %p226 = por %p224, %p225
      %p228 = scmp.ne.s32.totalorder %s211, %s227
      %p229 = scmp.eq.s32.totalorder %s25, 0
      %p230 = por %p228, %p229
      %p231 = scmp.le.s32.totalorder 1, %s19
      %p232 = scmp.lt.s32.totalorder %s19, 3
      %p233 = pnand %p231, %p232
      %p234 = pneg %p233
      // Predicated region
      $region9: #{tpu_custom_call.1} parent=5 // pred_check
        _
      $region10: #{tpu_custom_call.1} parent=5 // pred_check_branch
        %236 = sbr.rel (%p233) target = $region12
      $region11: #{tpu_custom_call.1} parent=5 // pred_region
        %s237 = ssub.s32 %s19, 1
        // Predicated region
        $region13: #{tpu_custom_call.1} parent=11 // pred_check
          %p238 = pneg %p92
        $region14: #{tpu_custom_call.1} parent=11 // pred_check_branch
          %240 = sbr.rel (%p238) target = $region16
        $region15: #{tpu_custom_call.1} parent=11 // pred_region
          _
        $region16: #{tpu_custom_call.1} parent=11 // pred_fallthru
          _
        // Predicated region
        $region17: #{tpu_custom_call.1} parent=11 // pred_check
          %p241 = pneg %p113
        $region18: #{tpu_custom_call.1} parent=11 // pred_check_branch
          %243 = sbr.rel (%p241) target = $region20
        $region19: #{tpu_custom_call.1} parent=11 // pred_region
          _
        $region20: #{tpu_custom_call.1} parent=11 // pred_fallthru
          _
        // Predicated region
        $region21: #{tpu_custom_call.1} parent=11 // pred_check
          %p244 = pneg %p134
        $region22: #{tpu_custom_call.1} parent=11 // pred_check_branch
          %246 = sbr.rel (%p244) target = $region24
        $region23: #{tpu_custom_call.1} parent=11 // pred_region
          _
        $region24: #{tpu_custom_call.1} parent=11 // pred_fallthru
          _
        // Predicated region
        $region25: #{tpu_custom_call.1} parent=11 // pred_check
          %p247 = pneg %p155
        $region26: #{tpu_custom_call.1} parent=11 // pred_check_branch
          %249 = sbr.rel (%p247) target = $region28
        $region27: #{tpu_custom_call.1} parent=11 // pred_region
          _
        $region28: #{tpu_custom_call.1} parent=11 // pred_fallthru
          _
        // Predicated region
        $region29: #{tpu_custom_call.1} parent=11 // pred_check
          %p250 = pneg %p176
        $region30: #{tpu_custom_call.1} parent=11 // pred_check_branch
          %252 = sbr.rel (%p250) target = $region32
        $region31: #{tpu_custom_call.1} parent=11 // pred_region
          _
        $region32: #{tpu_custom_call.1} parent=11 // pred_fallthru
          _
        // Predicated region
        $region33: #{tpu_custom_call.1} parent=11 // pred_check
          %p253 = pneg %p197
        $region34: #{tpu_custom_call.1} parent=11 // pred_check_branch
          %255 = sbr.rel (%p253) target = $region36
        $region35: #{tpu_custom_call.1} parent=11 // pred_region
          _
        $region36: #{tpu_custom_call.1} parent=11 // pred_fallthru
          _
      $region12: #{tpu_custom_call.1} parent=5 // pred_fallthru
        _
      %p256 = scmp.lt.s32.totalorder %s19, 2
      // Predicated region
      $region37: #{tpu_custom_call.1} parent=5 // pred_check
        %p257 = pneg %p256
      $region38: #{tpu_custom_call.1} parent=5 // pred_check_branch
        %259 = sbr.rel (%p257) target = $region40
      $region39: #{tpu_custom_call.1} parent=5 // pred_region
        // Predicated region
        $region41: #{tpu_custom_call.1} parent=39 // pred_check
          %p260 = pneg %p39
        $region42: #{tpu_custom_call.1} parent=39 // pred_check_branch
          %262 = sbr.rel (%p260) target = $region44
        $region43: #{tpu_custom_call.1} parent=39 // pred_region
          %s263 = smul.u32 128, %s19
          %p264 = scmp.lt.s32.totalorder %s263, 255
          %s265 = scalar_select %p264, %s263, 255
          %s266 = smul.addr %s265, 8
          %s267 = scalar_lea.vmem %s0, %s266
          %s268 = smul.u32 128, %s19
        $region44: #{tpu_custom_call.1} parent=39 // pred_fallthru
          _
        // Predicated region
        $region45: #{tpu_custom_call.1} parent=39 // pred_check
          %p269 = pneg %p65
        $region46: #{tpu_custom_call.1} parent=39 // pred_check_branch
          %271 = sbr.rel (%p269) target = $region48
        $region47: #{tpu_custom_call.1} parent=39 // pred_region
          %s272 = smul.u32 128, %s19
          %p273 = scmp.lt.s32.totalorder %s272, 255
          %s274 = scalar_select %p273, %s272, 255
          %s275 = smul.addr %s274, 8
          %s276 = scalar_lea.vmem %s1, %s275
          %s277 = smul.u32 128, %s19
        $region48: #{tpu_custom_call.1} parent=39 // pred_fallthru
          _
      $region40: #{tpu_custom_call.1} parent=5 // pred_fallthru
        _
      %p278 = scmp.le.s32.totalorder 1, %s19
      %p279 = scmp.lt.s32.totalorder %s19, 3
      %p280 = pnand %p278, %p279
      %p281 = pneg %p280
      // Predicated region
      $region49: #{tpu_custom_call.1} parent=5 // pred_check
        _
      $region50: #{tpu_custom_call.1} parent=5 // pred_check_branch
        %283 = sbr.rel (%p280) target = $region52
      $region51: #{tpu_custom_call.1} parent=5 // pred_region
        %s284 = ssub.s32 %s19, 1
        %s285 = smul.u32 128, %s24
        %p286 = scmp.lt.s32.totalorder %s285, 255
        %s287 = scalar_select %p286, %s285, 255
        %s288 = smul.addr %s287, 8
        %s289 = scalar_lea.vmem %s0, %s288
        %p290 = pneg %p45
        %p291 = pneg %p42
        %s292 = smul.u32 128, %s24
        %p293 = scmp.lt.s32.totalorder %s292, 255
        %s294 = scalar_select %p293, %s292, 255
        %s295 = smul.addr %s294, 8
        %s296 = scalar_lea.vmem %s1, %s295
        %p297 = pneg %p71
        %p298 = pneg %p68
        %p299 = pneg %p92
        %p300 = pneg %p89
        %p301 = pneg %p113
        %p302 = pneg %p110
        %p303 = pneg %p134
        %p304 = pneg %p131
        %p305 = pneg %p155
        %p306 = pneg %p152
        %p307 = pneg %p176
        %p308 = pneg %p173
        %p309 = pneg %p197
        %p310 = pneg %p194
        %p311 = pneg %p223
        %p312 = pneg %p220
        %s313 = sand.u32 %s210, 1
        %s314 = scalar_lea.sflag [#allocation4], %s313
        %s315 = sand.u32 %s210, 1
        %s316 = smul.addr %s315, 8
        %s317 = scalar_lea.vmem [#allocation3], %s316
        %s318 = smul.u32 128, %s24
        %p319 = scmp.lt.s32.totalorder %s318, 255
        %s320 = scalar_select %p319, %s318, 255
        %s321 = smul.addr %s320, 8
        %s322 = scalar_lea.vmem %s0, %s321
        %s323 = smul.u32 128, %s24
        %s324 = smul.u32 128, %s24
        %p325 = scmp.lt.s32.totalorder %s324, 255
        %s326 = scalar_select %p325, %s324, 255
        %s327 = smul.addr %s326, 8
        %s328 = scalar_lea.vmem %s1, %s327
        %s329 = smul.u32 128, %s24
        %s330 = smul.u32 8, %s24
        %v332 = vld [vmem:[%s322] sm:$0xff]
        %v333 = vld [vmem:[%s322 + $0x8] sm:$0xff]
        %v334 = vld [vmem:[%s322 + $0x10] sm:$0xff]
        %v335 = vld [vmem:[%s322 + $0x18] sm:$0xff]
        %v336 = vld [vmem:[%s322 + $0x20] sm:$0xff]
        %v337 = vld [vmem:[%s322 + $0x28] sm:$0xff]
        %v338 = vld [vmem:[%s322 + $0x30] sm:$0xff]
        %v339 = vld [vmem:[%s322 + $0x38] sm:$0xff]
        %v340 = vld [vmem:[%s322 + $0x40] sm:$0xff]
        %v341 = vld [vmem:[%s322 + $0x48] sm:$0xff]
        %v342 = vld [vmem:[%s322 + $0x50] sm:$0xff]
        %v343 = vld [vmem:[%s322 + $0x58] sm:$0xff]
        %v344 = vld [vmem:[%s322 + $0x60] sm:$0xff]
        %v345 = vld [vmem:[%s322 + $0x68] sm:$0xff]
        %v346 = vld [vmem:[%s322 + $0x70] sm:$0xff]
        %v347 = vld [vmem:[%s322 + $0x78] sm:$0xff]
        %v348 = vld [vmem:[%s322 + $0x80] sm:$0xff]
        %v349 = vld [vmem:[%s322 + $0x88] sm:$0xff]
        %v350 = vld [vmem:[%s322 + $0x90] sm:$0xff]
        %v351 = vld [vmem:[%s322 + $0x98] sm:$0xff]
        %v352 = vld [vmem:[%s322 + $0xa0] sm:$0xff]
        %v353 = vld [vmem:[%s322 + $0xa8] sm:$0xff]
        %v354 = vld [vmem:[%s322 + $0xb0] sm:$0xff]
        %v355 = vld [vmem:[%s322 + $0xb8] sm:$0xff]
        %v356 = vld [vmem:[%s322 + $0xc0] sm:$0xff]
        %v357 = vld [vmem:[%s322 + $0xc8] sm:$0xff]
        %v358 = vld [vmem:[%s322 + $0xd0] sm:$0xff]
        %v359 = vld [vmem:[%s322 + $0xd8] sm:$0xff]
        %v360 = vld [vmem:[%s322 + $0xe0] sm:$0xff]
        %v361 = vld [vmem:[%s322 + $0xe8] sm:$0xff]
        %v362 = vld [vmem:[%s322 + $0xf0] sm:$0xff]
        %v363 = vld [vmem:[%s322 + $0xf8] sm:$0xff]
        %v364 = vld [vmem:[%s322 + $0x100] sm:$0xff]
        %v365 = vld [vmem:[%s322 + $0x108] sm:$0xff]
        %v366 = vld [vmem:[%s322 + $0x110] sm:$0xff]
        %v367 = vld [vmem:[%s322 + $0x118] sm:$0xff]
        %v368 = vld [vmem:[%s322 + $0x120] sm:$0xff]
        %v369 = vld [vmem:[%s322 + $0x128] sm:$0xff]
        %v370 = vld [vmem:[%s322 + $0x130] sm:$0xff]
        %v371 = vld [vmem:[%s322 + $0x138] sm:$0xff]
        %v372 = vld [vmem:[%s322 + $0x140] sm:$0xff]
        %v373 = vld [vmem:[%s322 + $0x148] sm:$0xff]
        %v374 = vld [vmem:[%s322 + $0x150] sm:$0xff]
        %v375 = vld [vmem:[%s322 + $0x158] sm:$0xff]
        %v376 = vld [vmem:[%s322 + $0x160] sm:$0xff]
        %v377 = vld [vmem:[%s322 + $0x168] sm:$0xff]
        %v378 = vld [vmem:[%s322 + $0x170] sm:$0xff]
        %v379 = vld [vmem:[%s322 + $0x178] sm:$0xff]
        %v380 = vld [vmem:[%s322 + $0x180] sm:$0xff]
        %v381 = vld [vmem:[%s322 + $0x188] sm:$0xff]
        %v382 = vld [vmem:[%s322 + $0x190] sm:$0xff]
        %v383 = vld [vmem:[%s322 + $0x198] sm:$0xff]
        %v384 = vld [vmem:[%s322 + $0x1a0] sm:$0xff]
        %v385 = vld [vmem:[%s322 + $0x1a8] sm:$0xff]
        %v386 = vld [vmem:[%s322 + $0x1b0] sm:$0xff]
        %v387 = vld [vmem:[%s322 + $0x1b8] sm:$0xff]
        %v388 = vld [vmem:[%s322 + $0x1c0] sm:$0xff]
        %v389 = vld [vmem:[%s322 + $0x1c8] sm:$0xff]
        %v390 = vld [vmem:[%s322 + $0x1d0] sm:$0xff]
        %v391 = vld [vmem:[%s322 + $0x1d8] sm:$0xff]
        %v392 = vld [vmem:[%s322 + $0x1e0] sm:$0xff]
        %v393 = vld [vmem:[%s322 + $0x1e8] sm:$0xff]
        %v394 = vld [vmem:[%s322 + $0x1f0] sm:$0xff]
        %v395 = vld [vmem:[%s322 + $0x1f8] sm:$0xff]
        %v396 = vld [vmem:[%s322 + $0x200] sm:$0xff]
        %v397 = vld [vmem:[%s322 + $0x208] sm:$0xff]
        %v398 = vld [vmem:[%s322 + $0x210] sm:$0xff]
        %v399 = vld [vmem:[%s322 + $0x218] sm:$0xff]
        %v400 = vld [vmem:[%s322 + $0x220] sm:$0xff]
        %v401 = vld [vmem:[%s322 + $0x228] sm:$0xff]
        %v402 = vld [vmem:[%s322 + $0x230] sm:$0xff]
        %v403 = vld [vmem:[%s322 + $0x238] sm:$0xff]
        %v404 = vld [vmem:[%s322 + $0x240] sm:$0xff]
        %v405 = vld [vmem:[%s322 + $0x248] sm:$0xff]
        %v406 = vld [vmem:[%s322 + $0x250] sm:$0xff]
        %v407 = vld [vmem:[%s322 + $0x258] sm:$0xff]
        %v408 = vld [vmem:[%s322 + $0x260] sm:$0xff]
        %v409 = vld [vmem:[%s322 + $0x268] sm:$0xff]
        %v410 = vld [vmem:[%s322 + $0x270] sm:$0xff]
        %v411 = vld [vmem:[%s322 + $0x278] sm:$0xff]
        %v412 = vld [vmem:[%s322 + $0x280] sm:$0xff]
        %v413 = vld [vmem:[%s322 + $0x288] sm:$0xff]
        %v414 = vld [vmem:[%s322 + $0x290] sm:$0xff]
        %v415 = vld [vmem:[%s322 + $0x298] sm:$0xff]
        %v416 = vld [vmem:[%s322 + $0x2a0] sm:$0xff]
        %v417 = vld [vmem:[%s322 + $0x2a8] sm:$0xff]
        %v418 = vld [vmem:[%s322 + $0x2b0] sm:$0xff]
        %v419 = vld [vmem:[%s322 + $0x2b8] sm:$0xff]
        %v420 = vld [vmem:[%s322 + $0x2c0] sm:$0xff]
        %v421 = vld [vmem:[%s322 + $0x2c8] sm:$0xff]
        %v422 = vld [vmem:[%s322 + $0x2d0] sm:$0xff]
        %v423 = vld [vmem:[%s322 + $0x2d8] sm:$0xff]
        %v424 = vld [vmem:[%s322 + $0x2e0] sm:$0xff]
        %v425 = vld [vmem:[%s322 + $0x2e8] sm:$0xff]
        %v426 = vld [vmem:[%s322 + $0x2f0] sm:$0xff]
        %v427 = vld [vmem:[%s322 + $0x2f8] sm:$0xff]
        %v428 = vld [vmem:[%s322 + $0x300] sm:$0xff]
        %v429 = vld [vmem:[%s322 + $0x308] sm:$0xff]
        %v430 = vld [vmem:[%s322 + $0x310] sm:$0xff]
        %v431 = vld [vmem:[%s322 + $0x318] sm:$0xff]
        %v432 = vld [vmem:[%s322 + $0x320] sm:$0xff]
        %v433 = vld [vmem:[%s322 + $0x328] sm:$0xff]
        %v434 = vld [vmem:[%s322 + $0x330] sm:$0xff]
        %v435 = vld [vmem:[%s322 + $0x338] sm:$0xff]
        %v436 = vld [vmem:[%s322 + $0x340] sm:$0xff]
        %v437 = vld [vmem:[%s322 + $0x348] sm:$0xff]
        %v438 = vld [vmem:[%s322 + $0x350] sm:$0xff]
        %v439 = vld [vmem:[%s322 + $0x358] sm:$0xff]
        %v440 = vld [vmem:[%s322 + $0x360] sm:$0xff]
        %v441 = vld [vmem:[%s322 + $0x368] sm:$0xff]
        %v442 = vld [vmem:[%s322 + $0x370] sm:$0xff]
        %v443 = vld [vmem:[%s322 + $0x378] sm:$0xff]
        %v444 = vld [vmem:[%s322 + $0x380] sm:$0xff]
        %v445 = vld [vmem:[%s322 + $0x388] sm:$0xff]
        %v446 = vld [vmem:[%s322 + $0x390] sm:$0xff]
        %v447 = vld [vmem:[%s322 + $0x398] sm:$0xff]
        %v448 = vld [vmem:[%s322 + $0x3a0] sm:$0xff]
        %v449 = vld [vmem:[%s322 + $0x3a8] sm:$0xff]
        %v450 = vld [vmem:[%s322 + $0x3b0] sm:$0xff]
        %v451 = vld [vmem:[%s322 + $0x3b8] sm:$0xff]
        %v452 = vld [vmem:[%s322 + $0x3c0] sm:$0xff]
        %v453 = vld [vmem:[%s322 + $0x3c8] sm:$0xff]
        %v454 = vld [vmem:[%s322 + $0x3d0] sm:$0xff]
        %v455 = vld [vmem:[%s322 + $0x3d8] sm:$0xff]
        %v456 = vld [vmem:[%s322 + $0x3e0] sm:$0xff]
        %v457 = vld [vmem:[%s322 + $0x3e8] sm:$0xff]
        %v458 = vld [vmem:[%s322 + $0x3f0] sm:$0xff]
        %v459 = vld [vmem:[%s322 + $0x3f8] sm:$0xff]
        %v460 = vld [vmem:[%s328] sm:$0xff]
        %v461 = vld [vmem:[%s328 + $0x8] sm:$0xff]
        %v462 = vld [vmem:[%s328 + $0x10] sm:$0xff]
        %v463 = vld [vmem:[%s328 + $0x18] sm:$0xff]
        %v464 = vld [vmem:[%s328 + $0x20] sm:$0xff]
        %v465 = vld [vmem:[%s328 + $0x28] sm:$0xff]
        %v466 = vld [vmem:[%s328 + $0x30] sm:$0xff]
        %v467 = vld [vmem:[%s328 + $0x38] sm:$0xff]
        %v468 = vld [vmem:[%s328 + $0x40] sm:$0xff]
        %v469 = vld [vmem:[%s328 + $0x48] sm:$0xff]
        %v470 = vld [vmem:[%s328 + $0x50] sm:$0xff]
        %v471 = vld [vmem:[%s328 + $0x58] sm:$0xff]
        %v472 = vld [vmem:[%s328 + $0x60] sm:$0xff]
        %v473 = vld [vmem:[%s328 + $0x68] sm:$0xff]
        %v474 = vld [vmem:[%s328 + $0x70] sm:$0xff]
        %v475 = vld [vmem:[%s328 + $0x78] sm:$0xff]
        %v476 = vld [vmem:[%s328 + $0x80] sm:$0xff]
        %v477 = vld [vmem:[%s328 + $0x88] sm:$0xff]
        %v478 = vld [vmem:[%s328 + $0x90] sm:$0xff]
        %v479 = vld [vmem:[%s328 + $0x98] sm:$0xff]
        %v480 = vld [vmem:[%s328 + $0xa0] sm:$0xff]
        %v481 = vld [vmem:[%s328 + $0xa8] sm:$0xff]
        %v482 = vld [vmem:[%s328 + $0xb0] sm:$0xff]
        %v483 = vld [vmem:[%s328 + $0xb8] sm:$0xff]
        %v484 = vld [vmem:[%s328 + $0xc0] sm:$0xff]
        %v485 = vld [vmem:[%s328 + $0xc8] sm:$0xff]
        %v486 = vld [vmem:[%s328 + $0xd0] sm:$0xff]
        %v487 = vld [vmem:[%s328 + $0xd8] sm:$0xff]
        %v488 = vld [vmem:[%s328 + $0xe0] sm:$0xff]
        %v489 = vld [vmem:[%s328 + $0xe8] sm:$0xff]
        %v490 = vld [vmem:[%s328 + $0xf0] sm:$0xff]
        %v491 = vld [vmem:[%s328 + $0xf8] sm:$0xff]
        %v492 = vld [vmem:[%s328 + $0x100] sm:$0xff]
        %v493 = vld [vmem:[%s328 + $0x108] sm:$0xff]
        %v494 = vld [vmem:[%s328 + $0x110] sm:$0xff]
        %v495 = vld [vmem:[%s328 + $0x118] sm:$0xff]
        %v496 = vld [vmem:[%s328 + $0x120] sm:$0xff]
        %v497 = vld [vmem:[%s328 + $0x128] sm:$0xff]
        %v498 = vld [vmem:[%s328 + $0x130] sm:$0xff]
        %v499 = vld [vmem:[%s328 + $0x138] sm:$0xff]
        %v500 = vld [vmem:[%s328 + $0x140] sm:$0xff]
        %v501 = vld [vmem:[%s328 + $0x148] sm:$0xff]
        %v502 = vld [vmem:[%s328 + $0x150] sm:$0xff]
        %v503 = vld [vmem:[%s328 + $0x158] sm:$0xff]
        %v504 = vld [vmem:[%s328 + $0x160] sm:$0xff]
        %v505 = vld [vmem:[%s328 + $0x168] sm:$0xff]
        %v506 = vld [vmem:[%s328 + $0x170] sm:$0xff]
        %v507 = vld [vmem:[%s328 + $0x178] sm:$0xff]
        %v508 = vld [vmem:[%s328 + $0x180] sm:$0xff]
        %v509 = vld [vmem:[%s328 + $0x188] sm:$0xff]
        %v510 = vld [vmem:[%s328 + $0x190] sm:$0xff]
        %v511 = vld [vmem:[%s328 + $0x198] sm:$0xff]
        %v512 = vld [vmem:[%s328 + $0x1a0] sm:$0xff]
        %v513 = vld [vmem:[%s328 + $0x1a8] sm:$0xff]
        %v514 = vld [vmem:[%s328 + $0x1b0] sm:$0xff]
        %v515 = vld [vmem:[%s328 + $0x1b8] sm:$0xff]
        %v516 = vld [vmem:[%s328 + $0x1c0] sm:$0xff]
        %v517 = vld [vmem:[%s328 + $0x1c8] sm:$0xff]
        %v518 = vld [vmem:[%s328 + $0x1d0] sm:$0xff]
        %v519 = vld [vmem:[%s328 + $0x1d8] sm:$0xff]
        %v520 = vld [vmem:[%s328 + $0x1e0] sm:$0xff]
        %v521 = vld [vmem:[%s328 + $0x1e8] sm:$0xff]
        %v522 = vld [vmem:[%s328 + $0x1f0] sm:$0xff]
        %v523 = vld [vmem:[%s328 + $0x1f8] sm:$0xff]
        %v524 = vld [vmem:[%s328 + $0x200] sm:$0xff]
        %v525 = vld [vmem:[%s328 + $0x208] sm:$0xff]
        %v526 = vld [vmem:[%s328 + $0x210] sm:$0xff]
        %v527 = vld [vmem:[%s328 + $0x218] sm:$0xff]
        %v528 = vld [vmem:[%s328 + $0x220] sm:$0xff]
        %v529 = vld [vmem:[%s328 + $0x228] sm:$0xff]
        %v530 = vld [vmem:[%s328 + $0x230] sm:$0xff]
        %v531 = vld [vmem:[%s328 + $0x238] sm:$0xff]
        %v532 = vld [vmem:[%s328 + $0x240] sm:$0xff]
        %v533 = vld [vmem:[%s328 + $0x248] sm:$0xff]
        %v534 = vld [vmem:[%s328 + $0x250] sm:$0xff]
        %v535 = vld [vmem:[%s328 + $0x258] sm:$0xff]
        %v536 = vld [vmem:[%s328 + $0x260] sm:$0xff]
        %v537 = vld [vmem:[%s328 + $0x268] sm:$0xff]
        %v538 = vld [vmem:[%s328 + $0x270] sm:$0xff]
        %v539 = vld [vmem:[%s328 + $0x278] sm:$0xff]
        %v540 = vld [vmem:[%s328 + $0x280] sm:$0xff]
        %v541 = vld [vmem:[%s328 + $0x288] sm:$0xff]
        %v542 = vld [vmem:[%s328 + $0x290] sm:$0xff]
        %v543 = vld [vmem:[%s328 + $0x298] sm:$0xff]
        %v544 = vld [vmem:[%s328 + $0x2a0] sm:$0xff]
        %v545 = vld [vmem:[%s328 + $0x2a8] sm:$0xff]
        %v546 = vld [vmem:[%s328 + $0x2b0] sm:$0xff]
        %v547 = vld [vmem:[%s328 + $0x2b8] sm:$0xff]
        %v548 = vld [vmem:[%s328 + $0x2c0] sm:$0xff]
        %v549 = vld [vmem:[%s328 + $0x2c8] sm:$0xff]
        %v550 = vld [vmem:[%s328 + $0x2d0] sm:$0xff]
        %v551 = vld [vmem:[%s328 + $0x2d8] sm:$0xff]
        %v552 = vld [vmem:[%s328 + $0x2e0] sm:$0xff]
        %v553 = vld [vmem:[%s328 + $0x2e8] sm:$0xff]
        %v554 = vld [vmem:[%s328 + $0x2f0] sm:$0xff]
        %v555 = vld [vmem:[%s328 + $0x2f8] sm:$0xff]
        %v556 = vld [vmem:[%s328 + $0x300] sm:$0xff]
        %v557 = vld [vmem:[%s328 + $0x308] sm:$0xff]
        %v558 = vld [vmem:[%s328 + $0x310] sm:$0xff]
        %v559 = vld [vmem:[%s328 + $0x318] sm:$0xff]
        %v560 = vld [vmem:[%s328 + $0x320] sm:$0xff]
        %v561 = vld [vmem:[%s328 + $0x328] sm:$0xff]
        %v562 = vld [vmem:[%s328 + $0x330] sm:$0xff]
        %v563 = vld [vmem:[%s328 + $0x338] sm:$0xff]
        %v564 = vld [vmem:[%s328 + $0x340] sm:$0xff]
        %v565 = vld [vmem:[%s328 + $0x348] sm:$0xff]
        %v566 = vld [vmem:[%s328 + $0x350] sm:$0xff]
        %v567 = vld [vmem:[%s328 + $0x358] sm:$0xff]
        %v568 = vld [vmem:[%s328 + $0x360] sm:$0xff]
        %v569 = vld [vmem:[%s328 + $0x368] sm:$0xff]
        %v570 = vld [vmem:[%s328 + $0x370] sm:$0xff]
        %v571 = vld [vmem:[%s328 + $0x378] sm:$0xff]
        %v572 = vld [vmem:[%s328 + $0x380] sm:$0xff]
        %v573 = vld [vmem:[%s328 + $0x388] sm:$0xff]
        %v574 = vld [vmem:[%s328 + $0x390] sm:$0xff]
        %v575 = vld [vmem:[%s328 + $0x398] sm:$0xff]
        %v576 = vld [vmem:[%s328 + $0x3a0] sm:$0xff]
        %v577 = vld [vmem:[%s328 + $0x3a8] sm:$0xff]
        %v578 = vld [vmem:[%s328 + $0x3b0] sm:$0xff]
        %v579 = vld [vmem:[%s328 + $0x3b8] sm:$0xff]
        %v580 = vld [vmem:[%s328 + $0x3c0] sm:$0xff]
        %v581 = vld [vmem:[%s328 + $0x3c8] sm:$0xff]
        %v582 = vld [vmem:[%s328 + $0x3d0] sm:$0xff]
        %v583 = vld [vmem:[%s328 + $0x3d8] sm:$0xff]
        %v584 = vld [vmem:[%s328 + $0x3e0] sm:$0xff]
        %v585 = vld [vmem:[%s328 + $0x3e8] sm:$0xff]
        %v586 = vld [vmem:[%s328 + $0x3f0] sm:$0xff]
        %v587 = vld [vmem:[%s328 + $0x3f8] sm:$0xff]
        %v588 = vmul.f32 %v332, %v460
        %v589 = vmul.f32 %v333, %v461
        %v590 = vmul.f32 %v334, %v462
        %v591 = vmul.f32 %v335, %v463
        %v592 = vmul.f32 %v336, %v464
        %v593 = vmul.f32 %v337, %v465
        %v594 = vmul.f32 %v338, %v466
        %v595 = vmul.f32 %v339, %v467
        %v596 = vmul.f32 %v340, %v468
        %v597 = vmul.f32 %v341, %v469
        %v598 = vmul.f32 %v342, %v470
        %v599 = vmul.f32 %v343, %v471
        %v600 = vmul.f32 %v344, %v472
        %v601 = vmul.f32 %v345, %v473
        %v602 = vmul.f32 %v346, %v474
        %v603 = vmul.f32 %v347, %v475
        %v604 = vmul.f32 %v348, %v476
        %v605 = vmul.f32 %v349, %v477
        %v606 = vmul.f32 %v350, %v478
        %v607 = vmul.f32 %v351, %v479
        %v608 = vmul.f32 %v352, %v480
        %v609 = vmul.f32 %v353, %v481
        %v610 = vmul.f32 %v354, %v482
        %v611 = vmul.f32 %v355, %v483
        %v612 = vmul.f32 %v356, %v484
        %v613 = vmul.f32 %v357, %v485
        %v614 = vmul.f32 %v358, %v486
        %v615 = vmul.f32 %v359, %v487
        %v616 = vmul.f32 %v360, %v488
        %v617 = vmul.f32 %v361, %v489
        %v618 = vmul.f32 %v362, %v490
        %v619 = vmul.f32 %v363, %v491
        %v620 = vmul.f32 %v364, %v492
        %v621 = vmul.f32 %v365, %v493
        %v622 = vmul.f32 %v366, %v494
        %v623 = vmul.f32 %v367, %v495
        %v624 = vmul.f32 %v368, %v496
        %v625 = vmul.f32 %v369, %v497
        %v626 = vmul.f32 %v370, %v498
        %v627 = vmul.f32 %v371, %v499
        %v628 = vmul.f32 %v372, %v500
        %v629 = vmul.f32 %v373, %v501
        %v630 = vmul.f32 %v374, %v502
        %v631 = vmul.f32 %v375, %v503
        %v632 = vmul.f32 %v376, %v504
        %v633 = vmul.f32 %v377, %v505
        %v634 = vmul.f32 %v378, %v506
        %v635 = vmul.f32 %v379, %v507
        %v636 = vmul.f32 %v380, %v508
        %v637 = vmul.f32 %v381, %v509
        %v638 = vmul.f32 %v382, %v510
        %v639 = vmul.f32 %v383, %v511
        %v640 = vmul.f32 %v384, %v512
        %v641 = vmul.f32 %v385, %v513
        %v642 = vmul.f32 %v386, %v514
        %v643 = vmul.f32 %v387, %v515
        %v644 = vmul.f32 %v388, %v516
        %v645 = vmul.f32 %v389, %v517
        %v646 = vmul.f32 %v390, %v518
        %v647 = vmul.f32 %v391, %v519
        %v648 = vmul.f32 %v392, %v520
        %v649 = vmul.f32 %v393, %v521
        %v650 = vmul.f32 %v394, %v522
        %v651 = vmul.f32 %v395, %v523
        %v652 = vmul.f32 %v396, %v524
        %v653 = vmul.f32 %v397, %v525
        %v654 = vmul.f32 %v398, %v526
        %v655 = vmul.f32 %v399, %v527
        %v656 = vmul.f32 %v400, %v528
        %v657 = vmul.f32 %v401, %v529
        %v658 = vmul.f32 %v402, %v530
        %v659 = vmul.f32 %v403, %v531
        %v660 = vmul.f32 %v404, %v532
        %v661 = vmul.f32 %v405, %v533
        %v662 = vmul.f32 %v406, %v534
        %v663 = vmul.f32 %v407, %v535
        %v664 = vmul.f32 %v408, %v536
        %v665 = vmul.f32 %v409, %v537
        %v666 = vmul.f32 %v410, %v538
        %v667 = vmul.f32 %v411, %v539
        %v668 = vmul.f32 %v412, %v540
        %v669 = vmul.f32 %v413, %v541
        %v670 = vmul.f32 %v414, %v542
        %v671 = vmul.f32 %v415, %v543
        %v672 = vmul.f32 %v416, %v544
        %v673 = vmul.f32 %v417, %v545
        %v674 = vmul.f32 %v418, %v546
        %v675 = vmul.f32 %v419, %v547
        %v676 = vmul.f32 %v420, %v548
        %v677 = vmul.f32 %v421, %v549
        %v678 = vmul.f32 %v422, %v550
        %v679 = vmul.f32 %v423, %v551
        %v680 = vmul.f32 %v424, %v552
        %v681 = vmul.f32 %v425, %v553
        %v682 = vmul.f32 %v426, %v554
        %v683 = vmul.f32 %v427, %v555
        %v684 = vmul.f32 %v428, %v556
        %v685 = vmul.f32 %v429, %v557
        %v686 = vmul.f32 %v430, %v558
        %v687 = vmul.f32 %v431, %v559
        %v688 = vmul.f32 %v432, %v560
        %v689 = vmul.f32 %v433, %v561
        %v690 = vmul.f32 %v434, %v562
        %v691 = vmul.f32 %v435, %v563
        %v692 = vmul.f32 %v436, %v564
        %v693 = vmul.f32 %v437, %v565
        %v694 = vmul.f32 %v438, %v566
        %v695 = vmul.f32 %v439, %v567
        %v696 = vmul.f32 %v440, %v568
        %v697 = vmul.f32 %v441, %v569
        %v698 = vmul.f32 %v442, %v570
        %v699 = vmul.f32 %v443, %v571
        %v700 = vmul.f32 %v444, %v572
        %v701 = vmul.f32 %v445, %v573
        %v702 = vmul.f32 %v446, %v574
        %v703 = vmul.f32 %v447, %v575
        %v704 = vmul.f32 %v448, %v576
        %v705 = vmul.f32 %v449, %v577
        %v706 = vmul.f32 %v450, %v578
        %v707 = vmul.f32 %v451, %v579
        %v708 = vmul.f32 %v452, %v580
        %v709 = vmul.f32 %v453, %v581
        %v710 = vmul.f32 %v454, %v582
        %v711 = vmul.f32 %v455, %v583
        %v712 = vmul.f32 %v456, %v584
        %v713 = vmul.f32 %v457, %v585
        %v714 = vmul.f32 %v458, %v586
        %v715 = vmul.f32 %v459, %v587
        %v716 = vpack.c.bf16 %v589, %v588
        %v717 = vpack.c.bf16 %v591, %v590
        %v718 = vpack.c.bf16 %v593, %v592
        %v719 = vpack.c.bf16 %v595, %v594
        %v720 = vpack.c.bf16 %v597, %v596
        %v721 = vpack.c.bf16 %v599, %v598
        %v722 = vpack.c.bf16 %v601, %v600
        %v723 = vpack.c.bf16 %v603, %v602
        %v724 = vpack.c.bf16 %v605, %v604
        %v725 = vpack.c.bf16 %v607, %v606
        %v726 = vpack.c.bf16 %v609, %v608
        %v727 = vpack.c.bf16 %v611, %v610
        %v728 = vpack.c.bf16 %v613, %v612
        %v729 = vpack.c.bf16 %v615, %v614
        %v730 = vpack.c.bf16 %v617, %v616
        %v731 = vpack.c.bf16 %v619, %v618
        %v732 = vpack.c.bf16 %v621, %v620
        %v733 = vpack.c.bf16 %v623, %v622
        %v734 = vpack.c.bf16 %v625, %v624
        %v735 = vpack.c.bf16 %v627, %v626
        %v736 = vpack.c.bf16 %v629, %v628
        %v737 = vpack.c.bf16 %v631, %v630
        %v738 = vpack.c.bf16 %v633, %v632
        %v739 = vpack.c.bf16 %v635, %v634
        %v740 = vpack.c.bf16 %v637, %v636
        %v741 = vpack.c.bf16 %v639, %v638
        %v742 = vpack.c.bf16 %v641, %v640
        %v743 = vpack.c.bf16 %v643, %v642
        %v744 = vpack.c.bf16 %v645, %v644
        %v745 = vpack.c.bf16 %v647, %v646
        %v746 = vpack.c.bf16 %v649, %v648
        %v747 = vpack.c.bf16 %v651, %v650
        %v748 = vpack.c.bf16 %v653, %v652
        %v749 = vpack.c.bf16 %v655, %v654
        %v750 = vpack.c.bf16 %v657, %v656
        %v751 = vpack.c.bf16 %v659, %v658
        %v752 = vpack.c.bf16 %v661, %v660
        %v753 = vpack.c.bf16 %v663, %v662
        %v754 = vpack.c.bf16 %v665, %v664
        %v755 = vpack.c.bf16 %v667, %v666
        %v756 = vpack.c.bf16 %v669, %v668
        %v757 = vpack.c.bf16 %v671, %v670
        %v758 = vpack.c.bf16 %v673, %v672
        %v759 = vpack.c.bf16 %v675, %v674
        %v760 = vpack.c.bf16 %v677, %v676
        %v761 = vpack.c.bf16 %v679, %v678
        %v762 = vpack.c.bf16 %v681, %v680
        %v763 = vpack.c.bf16 %v683, %v682
        %v764 = vpack.c.bf16 %v685, %v684
        %v765 = vpack.c.bf16 %v687, %v686
        %v766 = vpack.c.bf16 %v689, %v688
        %v767 = vpack.c.bf16 %v691, %v690
        %v768 = vpack.c.bf16 %v693, %v692
        %v769 = vpack.c.bf16 %v695, %v694
        %v770 = vpack.c.bf16 %v697, %v696
        %v771 = vpack.c.bf16 %v699, %v698
        %v772 = vpack.c.bf16 %v701, %v700
        %v773 = vpack.c.bf16 %v703, %v702
        %v774 = vpack.c.bf16 %v705, %v704
        %v775 = vpack.c.bf16 %v707, %v706
        %v776 = vpack.c.bf16 %v709, %v708
        %v777 = vpack.c.bf16 %v711, %v710
        %v778 = vpack.c.bf16 %v713, %v712
        %v779 = vpack.c.bf16 %v715, %v714
        %v780 = vld [vmem:[%s2] sm:$0xf]
        %v781 = vld [vmem:[%s2 + $0x4] sm:$0xf]
        %v782 = vld [vmem:[%s2 + $0x8] sm:$0xf]
        %v783 = vld [vmem:[%s2 + $0xc] sm:$0xf]
        %v784 = vld [vmem:[%s3] sm:$0x1]
        %v786 = vperm.slane %v784, 0
        %v792 = vunpack.c.l.b16 %v780
        %v793 = vunpack.c.l.b16 %v781
        %v794 = vunpack.c.l.b16 %v782
        %v795 = vunpack.c.l.b16 %v783
        %v796 = vpack.c.b16 %v793, %v792
        %v797 = vpack.c.b16 %v795, %v794
        %vm800 = vcmask 261120
        %v802 = vsel %vm800, %v716, 0
        %v805 = vsel %vm800, %v717, 0
        %v808 = vsel %vm800, %v718, 0
        %v811 = vsel %vm800, %v719, 0
        %v814 = vsel %vm800, %v720, 0
        %v817 = vsel %vm800, %v721, 0
        %v820 = vsel %vm800, %v722, 0
        %v823 = vsel %vm800, %v723, 0
        %v826 = vsel %vm800, %v724, 0
        %v829 = vsel %vm800, %v725, 0
        %v832 = vsel %vm800, %v726, 0
        %v835 = vsel %vm800, %v727, 0
        %v838 = vsel %vm800, %v728, 0
        %v841 = vsel %vm800, %v729, 0
        %v844 = vsel %vm800, %v730, 0
        %v847 = vsel %vm800, %v731, 0
        %v850 = vsel %vm800, %v732, 0
        %v853 = vsel %vm800, %v733, 0
        %v856 = vsel %vm800, %v734, 0
        %v859 = vsel %vm800, %v735, 0
        %v862 = vsel %vm800, %v736, 0
        %v865 = vsel %vm800, %v737, 0
        %v868 = vsel %vm800, %v738, 0
        %v871 = vsel %vm800, %v739, 0
        %v874 = vsel %vm800, %v740, 0
        %v877 = vsel %vm800, %v741, 0
        %v880 = vsel %vm800, %v742, 0
        %v883 = vsel %vm800, %v743, 0
        %v886 = vsel %vm800, %v744, 0
        %v889 = vsel %vm800, %v745, 0
        %v892 = vsel %vm800, %v746, 0
        %v895 = vsel %vm800, %v747, 0
        %v898 = vsel %vm800, %v748, 0
        %v901 = vsel %vm800, %v749, 0
        %v904 = vsel %vm800, %v750, 0
        %v907 = vsel %vm800, %v751, 0
        %v910 = vsel %vm800, %v752, 0
        %v913 = vsel %vm800, %v753, 0
        %v916 = vsel %vm800, %v754, 0
        %v919 = vsel %vm800, %v755, 0
        %v922 = vsel %vm800, %v756, 0
        %v925 = vsel %vm800, %v757, 0
        %v928 = vsel %vm800, %v758, 0
        %v931 = vsel %vm800, %v759, 0
        %v934 = vsel %vm800, %v760, 0
        %v937 = vsel %vm800, %v761, 0
        %v940 = vsel %vm800, %v762, 0
        %v943 = vsel %vm800, %v763, 0
        %v946 = vsel %vm800, %v764, 0
        %v949 = vsel %vm800, %v765, 0
        %v952 = vsel %vm800, %v766, 0
        %v955 = vsel %vm800, %v767, 0
        %v958 = vsel %vm800, %v768, 0
        %v961 = vsel %vm800, %v769, 0
        %v964 = vsel %vm800, %v770, 0
        %v967 = vsel %vm800, %v771, 0
        %v970 = vsel %vm800, %v772, 0
        %v973 = vsel %vm800, %v773, 0
        %v976 = vsel %vm800, %v774, 0
        %v979 = vsel %vm800, %v775, 0
        %v982 = vsel %vm800, %v776, 0
        %v985 = vsel %vm800, %v777, 0
        %v988 = vsel %vm800, %v778, 0
        %v991 = vsel %vm800, %v779, 0
        %993 = vmatpush.bf16.msra.mxu0 0
        %994 = vmatpush.bf16.msra.mxu0 0
        %995 = vmatpush.bf16.msra.mxu0 0
        %996 = vmatpush.bf16.msra.mxu0 0
        %997 = vmatpush.bf16.msra.mxu0 0
        %998 = vmatpush.bf16.msra.mxu0 0
        %999 = vmatpush.bf16.msra.mxu0 %v797
        %1000 = vmatpush.bf16.msra.mxu0 %v796
        %1001 = vmatmul.bf16.gmra.mxu0 %v802
        %v1002 = vpop.f32.mrf.mxu0
        %v1003 = vadd.f32 %v786, %v1002
        %v1004 = vpop.f32.mrf.mxu0
        %v1005 = vadd.f32 %v786, %v1004
        %1006 = vmatmul.bf16.gmra.mxu0 %v805
        %v1007 = vpop.f32.mrf.mxu0
        %v1008 = vadd.f32 %v786, %v1007
        %v1009 = vpop.f32.mrf.mxu0
        %v1010 = vadd.f32 %v786, %v1009
        %1011 = vmatmul.bf16.gmra.mxu0 %v808
        %v1012 = vpop.f32.mrf.mxu0
        %v1013 = vadd.f32 %v786, %v1012
        %v1014 = vpop.f32.mrf.mxu0
        %v1015 = vadd.f32 %v786, %v1014
        %1016 = vmatmul.bf16.gmra.mxu0 %v811
        %v1017 = vpop.f32.mrf.mxu0
        %v1018 = vadd.f32 %v786, %v1017
        %v1019 = vpop.f32.mrf.mxu0
        %v1020 = vadd.f32 %v786, %v1019
        %1021 = vmatmul.bf16.gmra.mxu0 %v814
        %v1022 = vpop.f32.mrf.mxu0
        %v1023 = vadd.f32 %v786, %v1022
        %v1024 = vpop.f32.mrf.mxu0
        %v1025 = vadd.f32 %v786, %v1024
        %1026 = vmatmul.bf16.gmra.mxu0 %v817
        %v1027 = vpop.f32.mrf.mxu0
        %v1028 = vadd.f32 %v786, %v1027
        %v1029 = vpop.f32.mrf.mxu0
        %v1030 = vadd.f32 %v786, %v1029
        %1031 = vmatmul.bf16.gmra.mxu0 %v820
        %v1032 = vpop.f32.mrf.mxu0
        %v1033 = vadd.f32 %v786, %v1032
        %v1034 = vpop.f32.mrf.mxu0
        %v1035 = vadd.f32 %v786, %v1034
        %1036 = vmatmul.bf16.gmra.mxu0 %v823
        %v1037 = vpop.f32.mrf.mxu0
        %v1038 = vadd.f32 %v786, %v1037
        %v1039 = vpop.f32.mrf.mxu0
        %v1040 = vadd.f32 %v786, %v1039
        %1041 = vmatmul.bf16.gmra.mxu0 %v826
        %v1042 = vpop.f32.mrf.mxu0
        %v1043 = vadd.f32 %v786, %v1042
        %v1044 = vpop.f32.mrf.mxu0
        %v1045 = vadd.f32 %v786, %v1044
        %1046 = vmatmul.bf16.gmra.mxu0 %v829
        %v1047 = vpop.f32.mrf.mxu0
        %v1048 = vadd.f32 %v786, %v1047
        %v1049 = vpop.f32.mrf.mxu0
        %v1050 = vadd.f32 %v786, %v1049
        %1051 = vmatmul.bf16.gmra.mxu0 %v832
        %v1052 = vpop.f32.mrf.mxu0
        %v1053 = vadd.f32 %v786, %v1052
        %v1054 = vpop.f32.mrf.mxu0
        %v1055 = vadd.f32 %v786, %v1054
        %1056 = vmatmul.bf16.gmra.mxu0 %v835
        %v1057 = vpop.f32.mrf.mxu0
        %v1058 = vadd.f32 %v786, %v1057
        %v1059 = vpop.f32.mrf.mxu0
        %v1060 = vadd.f32 %v786, %v1059
        %1061 = vmatmul.bf16.gmra.mxu0 %v838
        %v1062 = vpop.f32.mrf.mxu0
        %v1063 = vadd.f32 %v786, %v1062
        %v1064 = vpop.f32.mrf.mxu0
        %v1065 = vadd.f32 %v786, %v1064
        %1066 = vmatmul.bf16.gmra.mxu0 %v841
        %v1067 = vpop.f32.mrf.mxu0
        %v1068 = vadd.f32 %v786, %v1067
        %v1069 = vpop.f32.mrf.mxu0
        %v1070 = vadd.f32 %v786, %v1069
        %1071 = vmatmul.bf16.gmra.mxu0 %v844
        %v1072 = vpop.f32.mrf.mxu0
        %v1073 = vadd.f32 %v786, %v1072
        %v1074 = vpop.f32.mrf.mxu0
        %v1075 = vadd.f32 %v786, %v1074
        %1076 = vmatmul.bf16.gmra.mxu0 %v847
        %v1077 = vpop.f32.mrf.mxu0
        %v1078 = vadd.f32 %v786, %v1077
        %v1079 = vpop.f32.mrf.mxu0
        %v1080 = vadd.f32 %v786, %v1079
        %1081 = vmatmul.bf16.gmra.mxu0 %v850
        %v1082 = vpop.f32.mrf.mxu0
        %v1083 = vadd.f32 %v786, %v1082
        %v1084 = vpop.f32.mrf.mxu0
        %v1085 = vadd.f32 %v786, %v1084
        %1086 = vmatmul.bf16.gmra.mxu0 %v853
        %v1087 = vpop.f32.mrf.mxu0
        %v1088 = vadd.f32 %v786, %v1087
        %v1089 = vpop.f32.mrf.mxu0
        %v1090 = vadd.f32 %v786, %v1089
        %1091 = vmatmul.bf16.gmra.mxu0 %v856
        %v1092 = vpop.f32.mrf.mxu0
        %v1093 = vadd.f32 %v786, %v1092
        %v1094 = vpop.f32.mrf.mxu0
        %v1095 = vadd.f32 %v786, %v1094
        %1096 = vmatmul.bf16.gmra.mxu0 %v859
        %v1097 = vpop.f32.mrf.mxu0
        %v1098 = vadd.f32 %v786, %v1097
        %v1099 = vpop.f32.mrf.mxu0
        %v1100 = vadd.f32 %v786, %v1099
        %1101 = vmatmul.bf16.gmra.mxu0 %v862
        %v1102 = vpop.f32.mrf.mxu0
        %v1103 = vadd.f32 %v786, %v1102
        %v1104 = vpop.f32.mrf.mxu0
        %v1105 = vadd.f32 %v786, %v1104
        %1106 = vmatmul.bf16.gmra.mxu0 %v865
        %v1107 = vpop.f32.mrf.mxu0
        %v1108 = vadd.f32 %v786, %v1107
        %v1109 = vpop.f32.mrf.mxu0
        %v1110 = vadd.f32 %v786, %v1109
        %1111 = vmatmul.bf16.gmra.mxu0 %v868
        %v1112 = vpop.f32.mrf.mxu0
        %v1113 = vadd.f32 %v786, %v1112
        %v1114 = vpop.f32.mrf.mxu0
        %v1115 = vadd.f32 %v786, %v1114
        %1116 = vmatmul.bf16.gmra.mxu0 %v871
        %v1117 = vpop.f32.mrf.mxu0
        %v1118 = vadd.f32 %v786, %v1117
        %v1119 = vpop.f32.mrf.mxu0
        %v1120 = vadd.f32 %v786, %v1119
        %1121 = vmatmul.bf16.gmra.mxu0 %v874
        %v1122 = vpop.f32.mrf.mxu0
        %v1123 = vadd.f32 %v786, %v1122
        %v1124 = vpop.f32.mrf.mxu0
        %v1125 = vadd.f32 %v786, %v1124
        %1126 = vmatmul.bf16.gmra.mxu0 %v877
        %v1127 = vpop.f32.mrf.mxu0
        %v1128 = vadd.f32 %v786, %v1127
        %v1129 = vpop.f32.mrf.mxu0
        %v1130 = vadd.f32 %v786, %v1129
        %1131 = vmatmul.bf16.gmra.mxu0 %v880
        %v1132 = vpop.f32.mrf.mxu0
        %v1133 = vadd.f32 %v786, %v1132
        %v1134 = vpop.f32.mrf.mxu0
        %v1135 = vadd.f32 %v786, %v1134
        %1136 = vmatmul.bf16.gmra.mxu0 %v883
        %v1137 = vpop.f32.mrf.mxu0
        %v1138 = vadd.f32 %v786, %v1137
        %v1139 = vpop.f32.mrf.mxu0
        %v1140 = vadd.f32 %v786, %v1139
        %1141 = vmatmul.bf16.gmra.mxu0 %v886
        %v1142 = vpop.f32.mrf.mxu0
        %v1143 = vadd.f32 %v786, %v1142
        %v1144 = vpop.f32.mrf.mxu0
        %v1145 = vadd.f32 %v786, %v1144
        %1146 = vmatmul.bf16.gmra.mxu0 %v889
        %v1147 = vpop.f32.mrf.mxu0
        %v1148 = vadd.f32 %v786, %v1147
        %v1149 = vpop.f32.mrf.mxu0
        %v1150 = vadd.f32 %v786, %v1149
        %1151 = vmatmul.bf16.gmra.mxu0 %v892
        %v1152 = vpop.f32.mrf.mxu0
        %v1153 = vadd.f32 %v786, %v1152
        %v1154 = vpop.f32.mrf.mxu0
        %v1155 = vadd.f32 %v786, %v1154
        %1156 = vmatmul.bf16.gmra.mxu0 %v895
        %v1157 = vpop.f32.mrf.mxu0
        %v1158 = vadd.f32 %v786, %v1157
        %v1159 = vpop.f32.mrf.mxu0
        %v1160 = vadd.f32 %v786, %v1159
        %1161 = vmatmul.bf16.gmra.mxu0 %v898
        %v1162 = vpop.f32.mrf.mxu0
        %v1163 = vadd.f32 %v786, %v1162
        %v1164 = vpop.f32.mrf.mxu0
        %v1165 = vadd.f32 %v786, %v1164
        %1166 = vmatmul.bf16.gmra.mxu0 %v901
        %v1167 = vpop.f32.mrf.mxu0
        %v1168 = vadd.f32 %v786, %v1167
        %v1169 = vpop.f32.mrf.mxu0
        %v1170 = vadd.f32 %v786, %v1169
        %1171 = vmatmul.bf16.gmra.mxu0 %v904
        %v1172 = vpop.f32.mrf.mxu0
        %v1173 = vadd.f32 %v786, %v1172
        %v1174 = vpop.f32.mrf.mxu0
        %v1175 = vadd.f32 %v786, %v1174
        %1176 = vmatmul.bf16.gmra.mxu0 %v907
        %v1177 = vpop.f32.mrf.mxu0
        %v1178 = vadd.f32 %v786, %v1177
        %v1179 = vpop.f32.mrf.mxu0
        %v1180 = vadd.f32 %v786, %v1179
        %1181 = vmatmul.bf16.gmra.mxu0 %v910
        %v1182 = vpop.f32.mrf.mxu0
        %v1183 = vadd.f32 %v786, %v1182
        %v1184 = vpop.f32.mrf.mxu0
        %v1185 = vadd.f32 %v786, %v1184
        %1186 = vmatmul.bf16.gmra.mxu0 %v913
        %v1187 = vpop.f32.mrf.mxu0
        %v1188 = vadd.f32 %v786, %v1187
        %v1189 = vpop.f32.mrf.mxu0
        %v1190 = vadd.f32 %v786, %v1189
        %1191 = vmatmul.bf16.gmra.mxu0 %v916
        %v1192 = vpop.f32.mrf.mxu0
        %v1193 = vadd.f32 %v786, %v1192
        %v1194 = vpop.f32.mrf.mxu0
        %v1195 = vadd.f32 %v786, %v1194
        %1196 = vmatmul.bf16.gmra.mxu0 %v919
        %v1197 = vpop.f32.mrf.mxu0
        %v1198 = vadd.f32 %v786, %v1197
        %v1199 = vpop.f32.mrf.mxu0
        %v1200 = vadd.f32 %v786, %v1199
        %1201 = vmatmul.bf16.gmra.mxu0 %v922
        %v1202 = vpop.f32.mrf.mxu0
        %v1203 = vadd.f32 %v786, %v1202
        %v1204 = vpop.f32.mrf.mxu0
        %v1205 = vadd.f32 %v786, %v1204
        %1206 = vmatmul.bf16.gmra.mxu0 %v925
        %v1207 = vpop.f32.mrf.mxu0
        %v1208 = vadd.f32 %v786, %v1207
        %v1209 = vpop.f32.mrf.mxu0
        %v1210 = vadd.f32 %v786, %v1209
        %1211 = vmatmul.bf16.gmra.mxu0 %v928
        %v1212 = vpop.f32.mrf.mxu0
        %v1213 = vadd.f32 %v786, %v1212
        %v1214 = vpop.f32.mrf.mxu0
        %v1215 = vadd.f32 %v786, %v1214
        %1216 = vmatmul.bf16.gmra.mxu0 %v931
        %v1217 = vpop.f32.mrf.mxu0
        %v1218 = vadd.f32 %v786, %v1217
        %v1219 = vpop.f32.mrf.mxu0
        %v1220 = vadd.f32 %v786, %v1219
        %1221 = vmatmul.bf16.gmra.mxu0 %v934
        %v1222 = vpop.f32.mrf.mxu0
        %v1223 = vadd.f32 %v786, %v1222
        %v1224 = vpop.f32.mrf.mxu0
        %v1225 = vadd.f32 %v786, %v1224
        %1226 = vmatmul.bf16.gmra.mxu0 %v937
        %v1227 = vpop.f32.mrf.mxu0
        %v1228 = vadd.f32 %v786, %v1227
        %v1229 = vpop.f32.mrf.mxu0
        %v1230 = vadd.f32 %v786, %v1229
        %1231 = vmatmul.bf16.gmra.mxu0 %v940
        %v1232 = vpop.f32.mrf.mxu0
        %v1233 = vadd.f32 %v786, %v1232
        %v1234 = vpop.f32.mrf.mxu0
        %v1235 = vadd.f32 %v786, %v1234
        %1236 = vmatmul.bf16.gmra.mxu0 %v943
        %v1237 = vpop.f32.mrf.mxu0
        %v1238 = vadd.f32 %v786, %v1237
        %v1239 = vpop.f32.mrf.mxu0
        %v1240 = vadd.f32 %v786, %v1239
        %1241 = vmatmul.bf16.gmra.mxu0 %v946
        %v1242 = vpop.f32.mrf.mxu0
        %v1243 = vadd.f32 %v786, %v1242
        %v1244 = vpop.f32.mrf.mxu0
        %v1245 = vadd.f32 %v786, %v1244
        %1246 = vmatmul.bf16.gmra.mxu0 %v949
        %v1247 = vpop.f32.mrf.mxu0
        %v1248 = vadd.f32 %v786, %v1247
        %v1249 = vpop.f32.mrf.mxu0
        %v1250 = vadd.f32 %v786, %v1249
        %1251 = vmatmul.bf16.gmra.mxu0 %v952
        %v1252 = vpop.f32.mrf.mxu0
        %v1253 = vadd.f32 %v786, %v1252
        %v1254 = vpop.f32.mrf.mxu0
        %v1255 = vadd.f32 %v786, %v1254
        %1256 = vmatmul.bf16.gmra.mxu0 %v955
        %v1257 = vpop.f32.mrf.mxu0
        %v1258 = vadd.f32 %v786, %v1257
        %v1259 = vpop.f32.mrf.mxu0
        %v1260 = vadd.f32 %v786, %v1259
        %1261 = vmatmul.bf16.gmra.mxu0 %v958
        %v1262 = vpop.f32.mrf.mxu0
        %v1263 = vadd.f32 %v786, %v1262
        %v1264 = vpop.f32.mrf.mxu0
        %v1265 = vadd.f32 %v786, %v1264
        %1266 = vmatmul.bf16.gmra.mxu0 %v961
        %v1267 = vpop.f32.mrf.mxu0
        %v1268 = vadd.f32 %v786, %v1267
        %v1269 = vpop.f32.mrf.mxu0
        %v1270 = vadd.f32 %v786, %v1269
        %1271 = vmatmul.bf16.gmra.mxu0 %v964
        %v1272 = vpop.f32.mrf.mxu0
        %v1273 = vadd.f32 %v786, %v1272
        %v1274 = vpop.f32.mrf.mxu0
        %v1275 = vadd.f32 %v786, %v1274
        %1276 = vmatmul.bf16.gmra.mxu0 %v967
        %v1277 = vpop.f32.mrf.mxu0
        %v1278 = vadd.f32 %v786, %v1277
        %v1279 = vpop.f32.mrf.mxu0
        %v1280 = vadd.f32 %v786, %v1279
        %1281 = vmatmul.bf16.gmra.mxu0 %v970
        %v1282 = vpop.f32.mrf.mxu0
        %v1283 = vadd.f32 %v786, %v1282
        %v1284 = vpop.f32.mrf.mxu0
        %v1285 = vadd.f32 %v786, %v1284
        %1286 = vmatmul.bf16.gmra.mxu0 %v973
        %v1287 = vpop.f32.mrf.mxu0
        %v1288 = vadd.f32 %v786, %v1287
        %v1289 = vpop.f32.mrf.mxu0
        %v1290 = vadd.f32 %v786, %v1289
        %1291 = vmatmul.bf16.gmra.mxu0 %v976
        %v1292 = vpop.f32.mrf.mxu0
        %v1293 = vadd.f32 %v786, %v1292
        %v1294 = vpop.f32.mrf.mxu0
        %v1295 = vadd.f32 %v786, %v1294
        %1296 = vmatmul.bf16.gmra.mxu0 %v979
        %v1297 = vpop.f32.mrf.mxu0
        %v1298 = vadd.f32 %v786, %v1297
        %v1299 = vpop.f32.mrf.mxu0
        %v1300 = vadd.f32 %v786, %v1299
        %1301 = vmatmul.bf16.gmra.mxu0 %v982
        %v1302 = vpop.f32.mrf.mxu0
        %v1303 = vadd.f32 %v786, %v1302
        %v1304 = vpop.f32.mrf.mxu0
        %v1305 = vadd.f32 %v786, %v1304
        %1306 = vmatmul.bf16.gmra.mxu0 %v985
        %v1307 = vpop.f32.mrf.mxu0
        %v1308 = vadd.f32 %v786, %v1307
        %v1309 = vpop.f32.mrf.mxu0
        %v1310 = vadd.f32 %v786, %v1309
        %1311 = vmatmul.bf16.gmra.mxu0 %v988
        %v1312 = vpop.f32.mrf.mxu0
        %v1313 = vadd.f32 %v786, %v1312
        %v1314 = vpop.f32.mrf.mxu0
        %v1315 = vadd.f32 %v786, %v1314
        %1316 = vmatmul.bf16.gmra.mxu0 %v991
        %v1317 = vpop.f32.mrf.mxu0
        %v1318 = vadd.f32 %v786, %v1317
        %v1319 = vpop.f32.mrf.mxu0
        %v1320 = vadd.f32 %v786, %v1319
        %1321 = vdwg.mxu0
        %v1322 = vmax.f32 %v1003, 0.0
        %v1323 = vmax.f32 %v1005, 0.0
        %v1324 = vmax.f32 %v1008, 0.0
        %v1325 = vmax.f32 %v1010, 0.0
        %v1326 = vmax.f32 %v1013, 0.0
        %v1327 = vmax.f32 %v1015, 0.0
        %v1328 = vmax.f32 %v1018, 0.0
        %v1329 = vmax.f32 %v1020, 0.0
        %v1330 = vmax.f32 %v1023, 0.0
        %v1331 = vmax.f32 %v1025, 0.0
        %v1332 = vmax.f32 %v1028, 0.0
        %v1333 = vmax.f32 %v1030, 0.0
        %v1334 = vmax.f32 %v1033, 0.0
        %v1335 = vmax.f32 %v1035, 0.0
        %v1336 = vmax.f32 %v1038, 0.0
        %v1337 = vmax.f32 %v1040, 0.0
        %v1338 = vmax.f32 %v1043, 0.0
        %v1339 = vmax.f32 %v1045, 0.0
        %v1340 = vmax.f32 %v1048, 0.0
        %v1341 = vmax.f32 %v1050, 0.0
        %v1342 = vmax.f32 %v1053, 0.0
        %v1343 = vmax.f32 %v1055, 0.0
        %v1344 = vmax.f32 %v1058, 0.0
        %v1345 = vmax.f32 %v1060, 0.0
        %v1346 = vmax.f32 %v1063, 0.0
        %v1347 = vmax.f32 %v1065, 0.0
        %v1348 = vmax.f32 %v1068, 0.0
        %v1349 = vmax.f32 %v1070, 0.0
        %v1350 = vmax.f32 %v1073, 0.0
        %v1351 = vmax.f32 %v1075, 0.0
        %v1352 = vmax.f32 %v1078, 0.0
        %v1353 = vmax.f32 %v1080, 0.0
        %v1354 = vmax.f32 %v1083, 0.0
        %v1355 = vmax.f32 %v1085, 0.0
        %v1356 = vmax.f32 %v1088, 0.0
        %v1357 = vmax.f32 %v1090, 0.0
        %v1358 = vmax.f32 %v1093, 0.0
        %v1359 = vmax.f32 %v1095, 0.0
        %v1360 = vmax.f32 %v1098, 0.0
        %v1361 = vmax.f32 %v1100, 0.0
        %v1362 = vmax.f32 %v1103, 0.0
        %v1363 = vmax.f32 %v1105, 0.0
        %v1364 = vmax.f32 %v1108, 0.0
        %v1365 = vmax.f32 %v1110, 0.0
        %v1366 = vmax.f32 %v1113, 0.0
        %v1367 = vmax.f32 %v1115, 0.0
        %v1368 = vmax.f32 %v1118, 0.0
        %v1369 = vmax.f32 %v1120, 0.0
        %v1370 = vmax.f32 %v1123, 0.0
        %v1371 = vmax.f32 %v1125, 0.0
        %v1372 = vmax.f32 %v1128, 0.0
        %v1373 = vmax.f32 %v1130, 0.0
        %v1374 = vmax.f32 %v1133, 0.0
        %v1375 = vmax.f32 %v1135, 0.0
        %v1376 = vmax.f32 %v1138, 0.0
        %v1377 = vmax.f32 %v1140, 0.0
        %v1378 = vmax.f32 %v1143, 0.0
        %v1379 = vmax.f32 %v1145, 0.0
        %v1380 = vmax.f32 %v1148, 0.0
        %v1381 = vmax.f32 %v1150, 0.0
        %v1382 = vmax.f32 %v1153, 0.0
        %v1383 = vmax.f32 %v1155, 0.0
        %v1384 = vmax.f32 %v1158, 0.0
        %v1385 = vmax.f32 %v1160, 0.0
        %v1386 = vmax.f32 %v1163, 0.0
        %v1387 = vmax.f32 %v1165, 0.0
        %v1388 = vmax.f32 %v1168, 0.0
        %v1389 = vmax.f32 %v1170, 0.0
        %v1390 = vmax.f32 %v1173, 0.0
        %v1391 = vmax.f32 %v1175, 0.0
        %v1392 = vmax.f32 %v1178, 0.0
        %v1393 = vmax.f32 %v1180, 0.0
        %v1394 = vmax.f32 %v1183, 0.0
        %v1395 = vmax.f32 %v1185, 0.0
        %v1396 = vmax.f32 %v1188, 0.0
        %v1397 = vmax.f32 %v1190, 0.0
        %v1398 = vmax.f32 %v1193, 0.0
        %v1399 = vmax.f32 %v1195, 0.0
        %v1400 = vmax.f32 %v1198, 0.0
        %v1401 = vmax.f32 %v1200, 0.0
        %v1402 = vmax.f32 %v1203, 0.0
        %v1403 = vmax.f32 %v1205, 0.0
        %v1404 = vmax.f32 %v1208, 0.0
        %v1405 = vmax.f32 %v1210, 0.0
        %v1406 = vmax.f32 %v1213, 0.0
        %v1407 = vmax.f32 %v1215, 0.0
        %v1408 = vmax.f32 %v1218, 0.0
        %v1409 = vmax.f32 %v1220, 0.0
        %v1410 = vmax.f32 %v1223, 0.0
        %v1411 = vmax.f32 %v1225, 0.0
        %v1412 = vmax.f32 %v1228, 0.0
        %v1413 = vmax.f32 %v1230, 0.0
        %v1414 = vmax.f32 %v1233, 0.0
        %v1415 = vmax.f32 %v1235, 0.0
        %v1416 = vmax.f32 %v1238, 0.0
        %v1417 = vmax.f32 %v1240, 0.0
        %v1418 = vmax.f32 %v1243, 0.0
        %v1419 = vmax.f32 %v1245, 0.0
        %v1420 = vmax.f32 %v1248, 0.0
        %v1421 = vmax.f32 %v1250, 0.0
        %v1422 = vmax.f32 %v1253, 0.0
        %v1423 = vmax.f32 %v1255, 0.0
        %v1424 = vmax.f32 %v1258, 0.0
        %v1425 = vmax.f32 %v1260, 0.0
        %v1426 = vmax.f32 %v1263, 0.0
        %v1427 = vmax.f32 %v1265, 0.0
        %v1428 = vmax.f32 %v1268, 0.0
        %v1429 = vmax.f32 %v1270, 0.0
        %v1430 = vmax.f32 %v1273, 0.0
        %v1431 = vmax.f32 %v1275, 0.0
        %v1432 = vmax.f32 %v1278, 0.0
        %v1433 = vmax.f32 %v1280, 0.0
        %v1434 = vmax.f32 %v1283, 0.0
        %v1435 = vmax.f32 %v1285, 0.0
        %v1436 = vmax.f32 %v1288, 0.0
        %v1437 = vmax.f32 %v1290, 0.0
        %v1438 = vmax.f32 %v1293, 0.0
        %v1439 = vmax.f32 %v1295, 0.0
        %v1440 = vmax.f32 %v1298, 0.0
        %v1441 = vmax.f32 %v1300, 0.0
        %v1442 = vmax.f32 %v1303, 0.0
        %v1443 = vmax.f32 %v1305, 0.0
        %v1444 = vmax.f32 %v1308, 0.0
        %v1445 = vmax.f32 %v1310, 0.0
        %v1446 = vmax.f32 %v1313, 0.0
        %v1447 = vmax.f32 %v1315, 0.0
        %v1448 = vmax.f32 %v1318, 0.0
        %v1449 = vmax.f32 %v1320, 0.0
        %v1450 = vpack.c.bf16 %v1323, %v1322
        %v1451 = vpack.c.bf16 %v1325, %v1324
        %v1452 = vpack.c.bf16 %v1327, %v1326
        %v1453 = vpack.c.bf16 %v1329, %v1328
        %v1454 = vpack.c.bf16 %v1331, %v1330
        %v1455 = vpack.c.bf16 %v1333, %v1332
        %v1456 = vpack.c.bf16 %v1335, %v1334
        %v1457 = vpack.c.bf16 %v1337, %v1336
        %v1458 = vpack.c.bf16 %v1339, %v1338
        %v1459 = vpack.c.bf16 %v1341, %v1340
        %v1460 = vpack.c.bf16 %v1343, %v1342
        %v1461 = vpack.c.bf16 %v1345, %v1344
        %v1462 = vpack.c.bf16 %v1347, %v1346
        %v1463 = vpack.c.bf16 %v1349, %v1348
        %v1464 = vpack.c.bf16 %v1351, %v1350
        %v1465 = vpack.c.bf16 %v1353, %v1352
        %v1466 = vpack.c.bf16 %v1355, %v1354
        %v1467 = vpack.c.bf16 %v1357, %v1356
        %v1468 = vpack.c.bf16 %v1359, %v1358
        %v1469 = vpack.c.bf16 %v1361, %v1360
        %v1470 = vpack.c.bf16 %v1363, %v1362
        %v1471 = vpack.c.bf16 %v1365, %v1364
        %v1472 = vpack.c.bf16 %v1367, %v1366
        %v1473 = vpack.c.bf16 %v1369, %v1368
        %v1474 = vpack.c.bf16 %v1371, %v1370
        %v1475 = vpack.c.bf16 %v1373, %v1372
        %v1476 = vpack.c.bf16 %v1375, %v1374
        %v1477 = vpack.c.bf16 %v1377, %v1376
        %v1478 = vpack.c.bf16 %v1379, %v1378
        %v1479 = vpack.c.bf16 %v1381, %v1380
        %v1480 = vpack.c.bf16 %v1383, %v1382
        %v1481 = vpack.c.bf16 %v1385, %v1384
        %v1482 = vpack.c.bf16 %v1387, %v1386
        %v1483 = vpack.c.bf16 %v1389, %v1388
        %v1484 = vpack.c.bf16 %v1391, %v1390
        %v1485 = vpack.c.bf16 %v1393, %v1392
        %v1486 = vpack.c.bf16 %v1395, %v1394
        %v1487 = vpack.c.bf16 %v1397, %v1396
        %v1488 = vpack.c.bf16 %v1399, %v1398
        %v1489 = vpack.c.bf16 %v1401, %v1400
        %v1490 = vpack.c.bf16 %v1403, %v1402
        %v1491 = vpack.c.bf16 %v1405, %v1404
        %v1492 = vpack.c.bf16 %v1407, %v1406
        %v1493 = vpack.c.bf16 %v1409, %v1408
        %v1494 = vpack.c.bf16 %v1411, %v1410
        %v1495 = vpack.c.bf16 %v1413, %v1412
        %v1496 = vpack.c.bf16 %v1415, %v1414
        %v1497 = vpack.c.bf16 %v1417, %v1416
        %v1498 = vpack.c.bf16 %v1419, %v1418
        %v1499 = vpack.c.bf16 %v1421, %v1420
        %v1500 = vpack.c.bf16 %v1423, %v1422
        %v1501 = vpack.c.bf16 %v1425, %v1424
        %v1502 = vpack.c.bf16 %v1427, %v1426
        %v1503 = vpack.c.bf16 %v1429, %v1428
        %v1504 = vpack.c.bf16 %v1431, %v1430
        %v1505 = vpack.c.bf16 %v1433, %v1432
        %v1506 = vpack.c.bf16 %v1435, %v1434
        %v1507 = vpack.c.bf16 %v1437, %v1436
        %v1508 = vpack.c.bf16 %v1439, %v1438
        %v1509 = vpack.c.bf16 %v1441, %v1440
        %v1510 = vpack.c.bf16 %v1443, %v1442
        %v1511 = vpack.c.bf16 %v1445, %v1444
        %v1512 = vpack.c.bf16 %v1447, %v1446
        %v1513 = vpack.c.bf16 %v1449, %v1448
        %v1514 = vld [vmem:[%s4] sm:$0xf]
        %v1515 = vld [vmem:[%s4 + $0x4] sm:$0xf]
        %v1516 = vld [vmem:[%s4 + $0x8] sm:$0xf]
        %v1517 = vld [vmem:[%s4 + $0xc] sm:$0xf]
        %v1518 = vld [vmem:[%s4 + $0x10] sm:$0xf]
        %v1519 = vld [vmem:[%s4 + $0x14] sm:$0xf]
        %v1520 = vld [vmem:[%s4 + $0x18] sm:$0xf]
        %v1521 = vld [vmem:[%s4 + $0x1c] sm:$0xf]
        %v1522 = vld [vmem:[%s5] sm:$0x1]
        %v1524 = vperm.slane %v1522, 0
        %v1534 = vunpack.c.l.b16 %v1514
        %v1535 = vunpack.c.l.b16 %v1515
        %v1536 = vunpack.c.l.b16 %v1516
        %v1537 = vunpack.c.l.b16 %v1517
        %v1538 = vunpack.c.l.b16 %v1518
        %v1539 = vunpack.c.l.b16 %v1519
        %v1540 = vunpack.c.l.b16 %v1520
        %v1541 = vunpack.c.l.b16 %v1521
        %v1542 = vpack.c.b16 %v1535, %v1534
        %v1543 = vpack.c.b16 %v1537, %v1536
        %v1544 = vpack.c.b16 %v1539, %v1538
        %v1545 = vpack.c.b16 %v1541, %v1540
        %vm1550 = vcmask 523264
        %v1552 = vsel %vm1550, %v1450, 0
        %v1555 = vsel %vm1550, %v1451, 0
        %v1558 = vsel %vm1550, %v1452, 0
        %v1561 = vsel %vm1550, %v1453, 0
        %v1564 = vsel %vm1550, %v1454, 0
        %v1567 = vsel %vm1550, %v1455, 0
        %v1570 = vsel %vm1550, %v1456, 0
        %v1573 = vsel %vm1550, %v1457, 0
        %v1576 = vsel %vm1550, %v1458, 0
        %v1579 = vsel %vm1550, %v1459, 0
        %v1582 = vsel %vm1550, %v1460, 0
        %v1585 = vsel %vm1550, %v1461, 0
        %v1588 = vsel %vm1550, %v1462, 0
        %v1591 = vsel %vm1550, %v1463, 0
        %v1594 = vsel %vm1550, %v1464, 0
        %v1597 = vsel %vm1550, %v1465, 0
        %v1600 = vsel %vm1550, %v1466, 0
        %v1603 = vsel %vm1550, %v1467, 0
        %v1606 = vsel %vm1550, %v1468, 0
        %v1609 = vsel %vm1550, %v1469, 0
        %v1612 = vsel %vm1550, %v1470, 0
        %v1615 = vsel %vm1550, %v1471, 0
        %v1618 = vsel %vm1550, %v1472, 0
        %v1621 = vsel %vm1550, %v1473, 0
        %v1624 = vsel %vm1550, %v1474, 0
        %v1627 = vsel %vm1550, %v1475, 0
        %v1630 = vsel %vm1550, %v1476, 0
        %v1633 = vsel %vm1550, %v1477, 0
        %v1636 = vsel %vm1550, %v1478, 0
        %v1639 = vsel %vm1550, %v1479, 0
        %v1642 = vsel %vm1550, %v1480, 0
        %v1645 = vsel %vm1550, %v1481, 0
        %v1648 = vsel %vm1550, %v1482, 0
        %v1651 = vsel %vm1550, %v1483, 0
        %v1654 = vsel %vm1550, %v1484, 0
        %v1657 = vsel %vm1550, %v1485, 0
        %v1660 = vsel %vm1550, %v1486, 0
        %v1663 = vsel %vm1550, %v1487, 0
        %v1666 = vsel %vm1550, %v1488, 0
        %v1669 = vsel %vm1550, %v1489, 0
        %v1672 = vsel %vm1550, %v1490, 0
        %v1675 = vsel %vm1550, %v1491, 0
        %v1678 = vsel %vm1550, %v1492, 0
        %v1681 = vsel %vm1550, %v1493, 0
        %v1684 = vsel %vm1550, %v1494, 0
        %v1687 = vsel %vm1550, %v1495, 0
        %v1690 = vsel %vm1550, %v1496, 0
        %v1693 = vsel %vm1550, %v1497, 0
        %v1696 = vsel %vm1550, %v1498, 0
        %v1699 = vsel %vm1550, %v1499, 0
        %v1702 = vsel %vm1550, %v1500, 0
        %v1705 = vsel %vm1550, %v1501, 0
        %v1708 = vsel %vm1550, %v1502, 0
        %v1711 = vsel %vm1550, %v1503, 0
        %v1714 = vsel %vm1550, %v1504, 0
        %v1717 = vsel %vm1550, %v1505, 0
        %v1720 = vsel %vm1550, %v1506, 0
        %v1723 = vsel %vm1550, %v1507, 0
        %v1726 = vsel %vm1550, %v1508, 0
        %v1729 = vsel %vm1550, %v1509, 0
        %v1732 = vsel %vm1550, %v1510, 0
        %v1735 = vsel %vm1550, %v1511, 0
        %v1738 = vsel %vm1550, %v1512, 0
        %v1741 = vsel %vm1550, %v1513, 0
        %1743 = vmatpush.bf16.msra.mxu0 0
        %1744 = vmatpush.bf16.msra.mxu0 0
        %1745 = vmatpush.bf16.msra.mxu0 0
        %1746 = vmatpush.bf16.msra.mxu0 0
        %1747 = vmatpush.bf16.msra.mxu0 %v1545
        %1748 = vmatpush.bf16.msra.mxu0 %v1544
        %1749 = vmatpush.bf16.msra.mxu0 %v1543
        %1750 = vmatpush.bf16.msra.mxu0 %v1542
        %1751 = vmatmul.bf16.gmra.mxu0 %v1552
        %v1752 = vpop.f32.mrf.mxu0
        %v1753 = vadd.f32 %v1524, %v1752
        %v1754 = vpop.f32.mrf.mxu0
        %v1755 = vadd.f32 %v1524, %v1754
        %1756 = vmatmul.bf16.gmra.mxu0 %v1555
        %v1757 = vpop.f32.mrf.mxu0
        %v1758 = vadd.f32 %v1524, %v1757
        %v1759 = vpop.f32.mrf.mxu0
        %v1760 = vadd.f32 %v1524, %v1759
        %1761 = vmatmul.bf16.gmra.mxu0 %v1558
        %v1762 = vpop.f32.mrf.mxu0
        %v1763 = vadd.f32 %v1524, %v1762
        %v1764 = vpop.f32.mrf.mxu0
        %v1765 = vadd.f32 %v1524, %v1764
        %1766 = vmatmul.bf16.gmra.mxu0 %v1561
        %v1767 = vpop.f32.mrf.mxu0
        %v1768 = vadd.f32 %v1524, %v1767
        %v1769 = vpop.f32.mrf.mxu0
        %v1770 = vadd.f32 %v1524, %v1769
        %1771 = vmatmul.bf16.gmra.mxu0 %v1564
        %v1772 = vpop.f32.mrf.mxu0
        %v1773 = vadd.f32 %v1524, %v1772
        %v1774 = vpop.f32.mrf.mxu0
        %v1775 = vadd.f32 %v1524, %v1774
        %1776 = vmatmul.bf16.gmra.mxu0 %v1567
        %v1777 = vpop.f32.mrf.mxu0
        %v1778 = vadd.f32 %v1524, %v1777
        %v1779 = vpop.f32.mrf.mxu0
        %v1780 = vadd.f32 %v1524, %v1779
        %1781 = vmatmul.bf16.gmra.mxu0 %v1570
        %v1782 = vpop.f32.mrf.mxu0
        %v1783 = vadd.f32 %v1524, %v1782
        %v1784 = vpop.f32.mrf.mxu0
        %v1785 = vadd.f32 %v1524, %v1784
        %1786 = vmatmul.bf16.gmra.mxu0 %v1573
        %v1787 = vpop.f32.mrf.mxu0
        %v1788 = vadd.f32 %v1524, %v1787
        %v1789 = vpop.f32.mrf.mxu0
        %v1790 = vadd.f32 %v1524, %v1789
        %1791 = vmatmul.bf16.gmra.mxu0 %v1576
        %v1792 = vpop.f32.mrf.mxu0
        %v1793 = vadd.f32 %v1524, %v1792
        %v1794 = vpop.f32.mrf.mxu0
        %v1795 = vadd.f32 %v1524, %v1794
        %1796 = vmatmul.bf16.gmra.mxu0 %v1579
        %v1797 = vpop.f32.mrf.mxu0
        %v1798 = vadd.f32 %v1524, %v1797
        %v1799 = vpop.f32.mrf.mxu0
        %v1800 = vadd.f32 %v1524, %v1799
        %1801 = vmatmul.bf16.gmra.mxu0 %v1582
        %v1802 = vpop.f32.mrf.mxu0
        %v1803 = vadd.f32 %v1524, %v1802
        %v1804 = vpop.f32.mrf.mxu0
        %v1805 = vadd.f32 %v1524, %v1804
        %1806 = vmatmul.bf16.gmra.mxu0 %v1585
        %v1807 = vpop.f32.mrf.mxu0
        %v1808 = vadd.f32 %v1524, %v1807
        %v1809 = vpop.f32.mrf.mxu0
        %v1810 = vadd.f32 %v1524, %v1809
        %1811 = vmatmul.bf16.gmra.mxu0 %v1588
        %v1812 = vpop.f32.mrf.mxu0
        %v1813 = vadd.f32 %v1524, %v1812
        %v1814 = vpop.f32.mrf.mxu0
        %v1815 = vadd.f32 %v1524, %v1814
        %1816 = vmatmul.bf16.gmra.mxu0 %v1591
        %v1817 = vpop.f32.mrf.mxu0
        %v1818 = vadd.f32 %v1524, %v1817
        %v1819 = vpop.f32.mrf.mxu0
        %v1820 = vadd.f32 %v1524, %v1819
        %1821 = vmatmul.bf16.gmra.mxu0 %v1594
        %v1822 = vpop.f32.mrf.mxu0
        %v1823 = vadd.f32 %v1524, %v1822
        %v1824 = vpop.f32.mrf.mxu0
        %v1825 = vadd.f32 %v1524, %v1824
        %1826 = vmatmul.bf16.gmra.mxu0 %v1597
        %v1827 = vpop.f32.mrf.mxu0
        %v1828 = vadd.f32 %v1524, %v1827
        %v1829 = vpop.f32.mrf.mxu0
        %v1830 = vadd.f32 %v1524, %v1829
        %1831 = vmatmul.bf16.gmra.mxu0 %v1600
        %v1832 = vpop.f32.mrf.mxu0
        %v1833 = vadd.f32 %v1524, %v1832
        %v1834 = vpop.f32.mrf.mxu0
        %v1835 = vadd.f32 %v1524, %v1834
        %1836 = vmatmul.bf16.gmra.mxu0 %v1603
        %v1837 = vpop.f32.mrf.mxu0
        %v1838 = vadd.f32 %v1524, %v1837
        %v1839 = vpop.f32.mrf.mxu0
        %v1840 = vadd.f32 %v1524, %v1839
        %1841 = vmatmul.bf16.gmra.mxu0 %v1606
        %v1842 = vpop.f32.mrf.mxu0
        %v1843 = vadd.f32 %v1524, %v1842
        %v1844 = vpop.f32.mrf.mxu0
        %v1845 = vadd.f32 %v1524, %v1844
        %1846 = vmatmul.bf16.gmra.mxu0 %v1609
        %v1847 = vpop.f32.mrf.mxu0
        %v1848 = vadd.f32 %v1524, %v1847
        %v1849 = vpop.f32.mrf.mxu0
        %v1850 = vadd.f32 %v1524, %v1849
        %1851 = vmatmul.bf16.gmra.mxu0 %v1612
        %v1852 = vpop.f32.mrf.mxu0
        %v1853 = vadd.f32 %v1524, %v1852
        %v1854 = vpop.f32.mrf.mxu0
        %v1855 = vadd.f32 %v1524, %v1854
        %1856 = vmatmul.bf16.gmra.mxu0 %v1615
        %v1857 = vpop.f32.mrf.mxu0
        %v1858 = vadd.f32 %v1524, %v1857
        %v1859 = vpop.f32.mrf.mxu0
        %v1860 = vadd.f32 %v1524, %v1859
        %1861 = vmatmul.bf16.gmra.mxu0 %v1618
        %v1862 = vpop.f32.mrf.mxu0
        %v1863 = vadd.f32 %v1524, %v1862
        %v1864 = vpop.f32.mrf.mxu0
        %v1865 = vadd.f32 %v1524, %v1864
        %1866 = vmatmul.bf16.gmra.mxu0 %v1621
        %v1867 = vpop.f32.mrf.mxu0
        %v1868 = vadd.f32 %v1524, %v1867
        %v1869 = vpop.f32.mrf.mxu0
        %v1870 = vadd.f32 %v1524, %v1869
        %1871 = vmatmul.bf16.gmra.mxu0 %v1624
        %v1872 = vpop.f32.mrf.mxu0
        %v1873 = vadd.f32 %v1524, %v1872
        %v1874 = vpop.f32.mrf.mxu0
        %v1875 = vadd.f32 %v1524, %v1874
        %1876 = vmatmul.bf16.gmra.mxu0 %v1627
        %v1877 = vpop.f32.mrf.mxu0
        %v1878 = vadd.f32 %v1524, %v1877
        %v1879 = vpop.f32.mrf.mxu0
        %v1880 = vadd.f32 %v1524, %v1879
        %1881 = vmatmul.bf16.gmra.mxu0 %v1630
        %v1882 = vpop.f32.mrf.mxu0
        %v1883 = vadd.f32 %v1524, %v1882
        %v1884 = vpop.f32.mrf.mxu0
        %v1885 = vadd.f32 %v1524, %v1884
        %1886 = vmatmul.bf16.gmra.mxu0 %v1633
        %v1887 = vpop.f32.mrf.mxu0
        %v1888 = vadd.f32 %v1524, %v1887
        %v1889 = vpop.f32.mrf.mxu0
        %v1890 = vadd.f32 %v1524, %v1889
        %1891 = vmatmul.bf16.gmra.mxu0 %v1636
        %v1892 = vpop.f32.mrf.mxu0
        %v1893 = vadd.f32 %v1524, %v1892
        %v1894 = vpop.f32.mrf.mxu0
        %v1895 = vadd.f32 %v1524, %v1894
        %1896 = vmatmul.bf16.gmra.mxu0 %v1639
        %v1897 = vpop.f32.mrf.mxu0
        %v1898 = vadd.f32 %v1524, %v1897
        %v1899 = vpop.f32.mrf.mxu0
        %v1900 = vadd.f32 %v1524, %v1899
        %1901 = vmatmul.bf16.gmra.mxu0 %v1642
        %v1902 = vpop.f32.mrf.mxu0
        %v1903 = vadd.f32 %v1524, %v1902
        %v1904 = vpop.f32.mrf.mxu0
        %v1905 = vadd.f32 %v1524, %v1904
        %1906 = vmatmul.bf16.gmra.mxu0 %v1645
        %v1907 = vpop.f32.mrf.mxu0
        %v1908 = vadd.f32 %v1524, %v1907
        %v1909 = vpop.f32.mrf.mxu0
        %v1910 = vadd.f32 %v1524, %v1909
        %1911 = vmatmul.bf16.gmra.mxu0 %v1648
        %v1912 = vpop.f32.mrf.mxu0
        %v1913 = vadd.f32 %v1524, %v1912
        %v1914 = vpop.f32.mrf.mxu0
        %v1915 = vadd.f32 %v1524, %v1914
        %1916 = vmatmul.bf16.gmra.mxu0 %v1651
        %v1917 = vpop.f32.mrf.mxu0
        %v1918 = vadd.f32 %v1524, %v1917
        %v1919 = vpop.f32.mrf.mxu0
        %v1920 = vadd.f32 %v1524, %v1919
        %1921 = vmatmul.bf16.gmra.mxu0 %v1654
        %v1922 = vpop.f32.mrf.mxu0
        %v1923 = vadd.f32 %v1524, %v1922
        %v1924 = vpop.f32.mrf.mxu0
        %v1925 = vadd.f32 %v1524, %v1924
        %1926 = vmatmul.bf16.gmra.mxu0 %v1657
        %v1927 = vpop.f32.mrf.mxu0
        %v1928 = vadd.f32 %v1524, %v1927
        %v1929 = vpop.f32.mrf.mxu0
        %v1930 = vadd.f32 %v1524, %v1929
        %1931 = vmatmul.bf16.gmra.mxu0 %v1660
        %v1932 = vpop.f32.mrf.mxu0
        %v1933 = vadd.f32 %v1524, %v1932
        %v1934 = vpop.f32.mrf.mxu0
        %v1935 = vadd.f32 %v1524, %v1934
        %1936 = vmatmul.bf16.gmra.mxu0 %v1663
        %v1937 = vpop.f32.mrf.mxu0
        %v1938 = vadd.f32 %v1524, %v1937
        %v1939 = vpop.f32.mrf.mxu0
        %v1940 = vadd.f32 %v1524, %v1939
        %1941 = vmatmul.bf16.gmra.mxu0 %v1666
        %v1942 = vpop.f32.mrf.mxu0
        %v1943 = vadd.f32 %v1524, %v1942
        %v1944 = vpop.f32.mrf.mxu0
        %v1945 = vadd.f32 %v1524, %v1944
        %1946 = vmatmul.bf16.gmra.mxu0 %v1669
        %v1947 = vpop.f32.mrf.mxu0
        %v1948 = vadd.f32 %v1524, %v1947
        %v1949 = vpop.f32.mrf.mxu0
        %v1950 = vadd.f32 %v1524, %v1949
        %1951 = vmatmul.bf16.gmra.mxu0 %v1672
        %v1952 = vpop.f32.mrf.mxu0
        %v1953 = vadd.f32 %v1524, %v1952
        %v1954 = vpop.f32.mrf.mxu0
        %v1955 = vadd.f32 %v1524, %v1954
        %1956 = vmatmul.bf16.gmra.mxu0 %v1675
        %v1957 = vpop.f32.mrf.mxu0
        %v1958 = vadd.f32 %v1524, %v1957
        %v1959 = vpop.f32.mrf.mxu0
        %v1960 = vadd.f32 %v1524, %v1959
        %1961 = vmatmul.bf16.gmra.mxu0 %v1678
        %v1962 = vpop.f32.mrf.mxu0
        %v1963 = vadd.f32 %v1524, %v1962
        %v1964 = vpop.f32.mrf.mxu0
        %v1965 = vadd.f32 %v1524, %v1964
        %1966 = vmatmul.bf16.gmra.mxu0 %v1681
        %v1967 = vpop.f32.mrf.mxu0
        %v1968 = vadd.f32 %v1524, %v1967
        %v1969 = vpop.f32.mrf.mxu0
        %v1970 = vadd.f32 %v1524, %v1969
        %1971 = vmatmul.bf16.gmra.mxu0 %v1684
        %v1972 = vpop.f32.mrf.mxu0
        %v1973 = vadd.f32 %v1524, %v1972
        %v1974 = vpop.f32.mrf.mxu0
        %v1975 = vadd.f32 %v1524, %v1974
        %1976 = vmatmul.bf16.gmra.mxu0 %v1687
        %v1977 = vpop.f32.mrf.mxu0
        %v1978 = vadd.f32 %v1524, %v1977
        %v1979 = vpop.f32.mrf.mxu0
        %v1980 = vadd.f32 %v1524, %v1979
        %1981 = vmatmul.bf16.gmra.mxu0 %v1690
        %v1982 = vpop.f32.mrf.mxu0
        %v1983 = vadd.f32 %v1524, %v1982
        %v1984 = vpop.f32.mrf.mxu0
        %v1985 = vadd.f32 %v1524, %v1984
        %1986 = vmatmul.bf16.gmra.mxu0 %v1693
        %v1987 = vpop.f32.mrf.mxu0
        %v1988 = vadd.f32 %v1524, %v1987
        %v1989 = vpop.f32.mrf.mxu0
        %v1990 = vadd.f32 %v1524, %v1989
        %1991 = vmatmul.bf16.gmra.mxu0 %v1696
        %v1992 = vpop.f32.mrf.mxu0
        %v1993 = vadd.f32 %v1524, %v1992
        %v1994 = vpop.f32.mrf.mxu0
        %v1995 = vadd.f32 %v1524, %v1994
        %1996 = vmatmul.bf16.gmra.mxu0 %v1699
        %v1997 = vpop.f32.mrf.mxu0
        %v1998 = vadd.f32 %v1524, %v1997
        %v1999 = vpop.f32.mrf.mxu0
        %v2000 = vadd.f32 %v1524, %v1999
        %2001 = vmatmul.bf16.gmra.mxu0 %v1702
        %v2002 = vpop.f32.mrf.mxu0
        %v2003 = vadd.f32 %v1524, %v2002
        %v2004 = vpop.f32.mrf.mxu0
        %v2005 = vadd.f32 %v1524, %v2004
        %2006 = vmatmul.bf16.gmra.mxu0 %v1705
        %v2007 = vpop.f32.mrf.mxu0
        %v2008 = vadd.f32 %v1524, %v2007
        %v2009 = vpop.f32.mrf.mxu0
        %v2010 = vadd.f32 %v1524, %v2009
        %2011 = vmatmul.bf16.gmra.mxu0 %v1708
        %v2012 = vpop.f32.mrf.mxu0
        %v2013 = vadd.f32 %v1524, %v2012
        %v2014 = vpop.f32.mrf.mxu0
        %v2015 = vadd.f32 %v1524, %v2014
        %2016 = vmatmul.bf16.gmra.mxu0 %v1711
        %v2017 = vpop.f32.mrf.mxu0
        %v2018 = vadd.f32 %v1524, %v2017
        %v2019 = vpop.f32.mrf.mxu0
        %v2020 = vadd.f32 %v1524, %v2019
        %2021 = vmatmul.bf16.gmra.mxu0 %v1714
        %v2022 = vpop.f32.mrf.mxu0
        %v2023 = vadd.f32 %v1524, %v2022
        %v2024 = vpop.f32.mrf.mxu0
        %v2025 = vadd.f32 %v1524, %v2024
        %2026 = vmatmul.bf16.gmra.mxu0 %v1717
        %v2027 = vpop.f32.mrf.mxu0
        %v2028 = vadd.f32 %v1524, %v2027
        %v2029 = vpop.f32.mrf.mxu0
        %v2030 = vadd.f32 %v1524, %v2029
        %2031 = vmatmul.bf16.gmra.mxu0 %v1720
        %v2032 = vpop.f32.mrf.mxu0
        %v2033 = vadd.f32 %v1524, %v2032
        %v2034 = vpop.f32.mrf.mxu0
        %v2035 = vadd.f32 %v1524, %v2034
        %2036 = vmatmul.bf16.gmra.mxu0 %v1723
        %v2037 = vpop.f32.mrf.mxu0
        %v2038 = vadd.f32 %v1524, %v2037
        %v2039 = vpop.f32.mrf.mxu0
        %v2040 = vadd.f32 %v1524, %v2039
        %2041 = vmatmul.bf16.gmra.mxu0 %v1726
        %v2042 = vpop.f32.mrf.mxu0
        %v2043 = vadd.f32 %v1524, %v2042
        %v2044 = vpop.f32.mrf.mxu0
        %v2045 = vadd.f32 %v1524, %v2044
        %2046 = vmatmul.bf16.gmra.mxu0 %v1729
        %v2047 = vpop.f32.mrf.mxu0
        %v2048 = vadd.f32 %v1524, %v2047
        %v2049 = vpop.f32.mrf.mxu0
        %v2050 = vadd.f32 %v1524, %v2049
        %2051 = vmatmul.bf16.gmra.mxu0 %v1732
        %v2052 = vpop.f32.mrf.mxu0
        %v2053 = vadd.f32 %v1524, %v2052
        %v2054 = vpop.f32.mrf.mxu0
        %v2055 = vadd.f32 %v1524, %v2054
        %2056 = vmatmul.bf16.gmra.mxu0 %v1735
        %v2057 = vpop.f32.mrf.mxu0
        %v2058 = vadd.f32 %v1524, %v2057
        %v2059 = vpop.f32.mrf.mxu0
        %v2060 = vadd.f32 %v1524, %v2059
        %2061 = vmatmul.bf16.gmra.mxu0 %v1738
        %v2062 = vpop.f32.mrf.mxu0
        %v2063 = vadd.f32 %v1524, %v2062
        %v2064 = vpop.f32.mrf.mxu0
        %v2065 = vadd.f32 %v1524, %v2064
        %2066 = vmatmul.bf16.gmra.mxu0 %v1741
        %v2067 = vpop.f32.mrf.mxu0
        %v2068 = vadd.f32 %v1524, %v2067
        %v2069 = vpop.f32.mrf.mxu0
        %v2070 = vadd.f32 %v1524, %v2069
        %2071 = vdwg.mxu0
        %v2072 = vmax.f32 %v1753, 0.0
        %v2073 = vmax.f32 %v1755, 0.0
        %v2074 = vmax.f32 %v1758, 0.0
        %v2075 = vmax.f32 %v1760, 0.0
        %v2076 = vmax.f32 %v1763, 0.0
        %v2077 = vmax.f32 %v1765, 0.0
        %v2078 = vmax.f32 %v1768, 0.0
        %v2079 = vmax.f32 %v1770, 0.0
        %v2080 = vmax.f32 %v1773, 0.0
        %v2081 = vmax.f32 %v1775, 0.0
        %v2082 = vmax.f32 %v1778, 0.0
        %v2083 = vmax.f32 %v1780, 0.0
        %v2084 = vmax.f32 %v1783, 0.0
        %v2085 = vmax.f32 %v1785, 0.0
        %v2086 = vmax.f32 %v1788, 0.0
        %v2087 = vmax.f32 %v1790, 0.0
        %v2088 = vmax.f32 %v1793, 0.0
        %v2089 = vmax.f32 %v1795, 0.0
        %v2090 = vmax.f32 %v1798, 0.0
        %v2091 = vmax.f32 %v1800, 0.0
        %v2092 = vmax.f32 %v1803, 0.0
        %v2093 = vmax.f32 %v1805, 0.0
        %v2094 = vmax.f32 %v1808, 0.0
        %v2095 = vmax.f32 %v1810, 0.0
        %v2096 = vmax.f32 %v1813, 0.0
        %v2097 = vmax.f32 %v1815, 0.0
        %v2098 = vmax.f32 %v1818, 0.0
        %v2099 = vmax.f32 %v1820, 0.0
        %v2100 = vmax.f32 %v1823, 0.0
        %v2101 = vmax.f32 %v1825, 0.0
        %v2102 = vmax.f32 %v1828, 0.0
        %v2103 = vmax.f32 %v1830, 0.0
        %v2104 = vmax.f32 %v1833, 0.0
        %v2105 = vmax.f32 %v1835, 0.0
        %v2106 = vmax.f32 %v1838, 0.0
        %v2107 = vmax.f32 %v1840, 0.0
        %v2108 = vmax.f32 %v1843, 0.0
        %v2109 = vmax.f32 %v1845, 0.0
        %v2110 = vmax.f32 %v1848, 0.0
        %v2111 = vmax.f32 %v1850, 0.0
        %v2112 = vmax.f32 %v1853, 0.0
        %v2113 = vmax.f32 %v1855, 0.0
        %v2114 = vmax.f32 %v1858, 0.0
        %v2115 = vmax.f32 %v1860, 0.0
        %v2116 = vmax.f32 %v1863, 0.0
        %v2117 = vmax.f32 %v1865, 0.0
        %v2118 = vmax.f32 %v1868, 0.0
        %v2119 = vmax.f32 %v1870, 0.0
        %v2120 = vmax.f32 %v1873, 0.0
        %v2121 = vmax.f32 %v1875, 0.0
        %v2122 = vmax.f32 %v1878, 0.0
        %v2123 = vmax.f32 %v1880, 0.0
        %v2124 = vmax.f32 %v1883, 0.0
        %v2125 = vmax.f32 %v1885, 0.0
        %v2126 = vmax.f32 %v1888, 0.0
        %v2127 = vmax.f32 %v1890, 0.0
        %v2128 = vmax.f32 %v1893, 0.0
        %v2129 = vmax.f32 %v1895, 0.0
        %v2130 = vmax.f32 %v1898, 0.0
        %v2131 = vmax.f32 %v1900, 0.0
        %v2132 = vmax.f32 %v1903, 0.0
        %v2133 = vmax.f32 %v1905, 0.0
        %v2134 = vmax.f32 %v1908, 0.0
        %v2135 = vmax.f32 %v1910, 0.0
        %v2136 = vmax.f32 %v1913, 0.0
        %v2137 = vmax.f32 %v1915, 0.0
        %v2138 = vmax.f32 %v1918, 0.0
        %v2139 = vmax.f32 %v1920, 0.0
        %v2140 = vmax.f32 %v1923, 0.0
        %v2141 = vmax.f32 %v1925, 0.0
        %v2142 = vmax.f32 %v1928, 0.0
        %v2143 = vmax.f32 %v1930, 0.0
        %v2144 = vmax.f32 %v1933, 0.0
        %v2145 = vmax.f32 %v1935, 0.0
        %v2146 = vmax.f32 %v1938, 0.0
        %v2147 = vmax.f32 %v1940, 0.0
        %v2148 = vmax.f32 %v1943, 0.0
        %v2149 = vmax.f32 %v1945, 0.0
        %v2150 = vmax.f32 %v1948, 0.0
        %v2151 = vmax.f32 %v1950, 0.0
        %v2152 = vmax.f32 %v1953, 0.0
        %v2153 = vmax.f32 %v1955, 0.0
        %v2154 = vmax.f32 %v1958, 0.0
        %v2155 = vmax.f32 %v1960, 0.0
        %v2156 = vmax.f32 %v1963, 0.0
        %v2157 = vmax.f32 %v1965, 0.0
        %v2158 = vmax.f32 %v1968, 0.0
        %v2159 = vmax.f32 %v1970, 0.0
        %v2160 = vmax.f32 %v1973, 0.0
        %v2161 = vmax.f32 %v1975, 0.0
        %v2162 = vmax.f32 %v1978, 0.0
        %v2163 = vmax.f32 %v1980, 0.0
        %v2164 = vmax.f32 %v1983, 0.0
        %v2165 = vmax.f32 %v1985, 0.0
        %v2166 = vmax.f32 %v1988, 0.0
        %v2167 = vmax.f32 %v1990, 0.0
        %v2168 = vmax.f32 %v1993, 0.0
        %v2169 = vmax.f32 %v1995, 0.0
        %v2170 = vmax.f32 %v1998, 0.0
        %v2171 = vmax.f32 %v2000, 0.0
        %v2172 = vmax.f32 %v2003, 0.0
        %v2173 = vmax.f32 %v2005, 0.0
        %v2174 = vmax.f32 %v2008, 0.0
        %v2175 = vmax.f32 %v2010, 0.0
        %v2176 = vmax.f32 %v2013, 0.0
        %v2177 = vmax.f32 %v2015, 0.0
        %v2178 = vmax.f32 %v2018, 0.0
        %v2179 = vmax.f32 %v2020, 0.0
        %v2180 = vmax.f32 %v2023, 0.0
        %v2181 = vmax.f32 %v2025, 0.0
        %v2182 = vmax.f32 %v2028, 0.0
        %v2183 = vmax.f32 %v2030, 0.0
        %v2184 = vmax.f32 %v2033, 0.0
        %v2185 = vmax.f32 %v2035, 0.0
        %v2186 = vmax.f32 %v2038, 0.0
        %v2187 = vmax.f32 %v2040, 0.0
        %v2188 = vmax.f32 %v2043, 0.0
        %v2189 = vmax.f32 %v2045, 0.0
        %v2190 = vmax.f32 %v2048, 0.0
        %v2191 = vmax.f32 %v2050, 0.0
        %v2192 = vmax.f32 %v2053, 0.0
        %v2193 = vmax.f32 %v2055, 0.0
        %v2194 = vmax.f32 %v2058, 0.0
        %v2195 = vmax.f32 %v2060, 0.0
        %v2196 = vmax.f32 %v2063, 0.0
        %v2197 = vmax.f32 %v2065, 0.0
        %v2198 = vmax.f32 %v2068, 0.0
        %v2199 = vmax.f32 %v2070, 0.0
        %v2200 = vpack.c.bf16 %v2073, %v2072
        %v2201 = vpack.c.bf16 %v2075, %v2074
        %v2202 = vpack.c.bf16 %v2077, %v2076
        %v2203 = vpack.c.bf16 %v2079, %v2078
        %v2204 = vpack.c.bf16 %v2081, %v2080
        %v2205 = vpack.c.bf16 %v2083, %v2082
        %v2206 = vpack.c.bf16 %v2085, %v2084
        %v2207 = vpack.c.bf16 %v2087, %v2086
        %v2208 = vpack.c.bf16 %v2089, %v2088
        %v2209 = vpack.c.bf16 %v2091, %v2090
        %v2210 = vpack.c.bf16 %v2093, %v2092
        %v2211 = vpack.c.bf16 %v2095, %v2094
        %v2212 = vpack.c.bf16 %v2097, %v2096
        %v2213 = vpack.c.bf16 %v2099, %v2098
        %v2214 = vpack.c.bf16 %v2101, %v2100
        %v2215 = vpack.c.bf16 %v2103, %v2102
        %v2216 = vpack.c.bf16 %v2105, %v2104
        %v2217 = vpack.c.bf16 %v2107, %v2106
        %v2218 = vpack.c.bf16 %v2109, %v2108
        %v2219 = vpack.c.bf16 %v2111, %v2110
        %v2220 = vpack.c.bf16 %v2113, %v2112
        %v2221 = vpack.c.bf16 %v2115, %v2114
        %v2222 = vpack.c.bf16 %v2117, %v2116
        %v2223 = vpack.c.bf16 %v2119, %v2118
        %v2224 = vpack.c.bf16 %v2121, %v2120
        %v2225 = vpack.c.bf16 %v2123, %v2122
        %v2226 = vpack.c.bf16 %v2125, %v2124
        %v2227 = vpack.c.bf16 %v2127, %v2126
        %v2228 = vpack.c.bf16 %v2129, %v2128
        %v2229 = vpack.c.bf16 %v2131, %v2130
        %v2230 = vpack.c.bf16 %v2133, %v2132
        %v2231 = vpack.c.bf16 %v2135, %v2134
        %v2232 = vpack.c.bf16 %v2137, %v2136
        %v2233 = vpack.c.bf16 %v2139, %v2138
        %v2234 = vpack.c.bf16 %v2141, %v2140
        %v2235 = vpack.c.bf16 %v2143, %v2142
        %v2236 = vpack.c.bf16 %v2145, %v2144
        %v2237 = vpack.c.bf16 %v2147, %v2146
        %v2238 = vpack.c.bf16 %v2149, %v2148
        %v2239 = vpack.c.bf16 %v2151, %v2150
        %v2240 = vpack.c.bf16 %v2153, %v2152
        %v2241 = vpack.c.bf16 %v2155, %v2154
        %v2242 = vpack.c.bf16 %v2157, %v2156
        %v2243 = vpack.c.bf16 %v2159, %v2158
        %v2244 = vpack.c.bf16 %v2161, %v2160
        %v2245 = vpack.c.bf16 %v2163, %v2162
        %v2246 = vpack.c.bf16 %v2165, %v2164
        %v2247 = vpack.c.bf16 %v2167, %v2166
        %v2248 = vpack.c.bf16 %v2169, %v2168
        %v2249 = vpack.c.bf16 %v2171, %v2170
        %v2250 = vpack.c.bf16 %v2173, %v2172
        %v2251 = vpack.c.bf16 %v2175, %v2174
        %v2252 = vpack.c.bf16 %v2177, %v2176
        %v2253 = vpack.c.bf16 %v2179, %v2178
        %v2254 = vpack.c.bf16 %v2181, %v2180
        %v2255 = vpack.c.bf16 %v2183, %v2182
        %v2256 = vpack.c.bf16 %v2185, %v2184
        %v2257 = vpack.c.bf16 %v2187, %v2186
        %v2258 = vpack.c.bf16 %v2189, %v2188
        %v2259 = vpack.c.bf16 %v2191, %v2190
        %v2260 = vpack.c.bf16 %v2193, %v2192
        %v2261 = vpack.c.bf16 %v2195, %v2194
        %v2262 = vpack.c.bf16 %v2197, %v2196
        %v2263 = vpack.c.bf16 %v2199, %v2198
        %v2264 = vld [vmem:[%s6] sm:$0xf]
        %v2266 = vsel %vm1550, %v2264, 0
        %v2269 = vsel %vm1550, %v2200, 0
        %v2272 = vsel %vm1550, %v2201, 0
        %v2275 = vsel %vm1550, %v2202, 0
        %v2278 = vsel %vm1550, %v2203, 0
        %v2281 = vsel %vm1550, %v2204, 0
        %v2284 = vsel %vm1550, %v2205, 0
        %v2287 = vsel %vm1550, %v2206, 0
        %v2290 = vsel %vm1550, %v2207, 0
        %v2293 = vsel %vm1550, %v2208, 0
        %v2296 = vsel %vm1550, %v2209, 0
        %v2299 = vsel %vm1550, %v2210, 0
        %v2302 = vsel %vm1550, %v2211, 0
        %v2305 = vsel %vm1550, %v2212, 0
        %v2308 = vsel %vm1550, %v2213, 0
        %v2311 = vsel %vm1550, %v2214, 0
        %v2314 = vsel %vm1550, %v2215, 0
        %v2317 = vsel %vm1550, %v2216, 0
        %v2320 = vsel %vm1550, %v2217, 0
        %v2323 = vsel %vm1550, %v2218, 0
        %v2326 = vsel %vm1550, %v2219, 0
        %v2329 = vsel %vm1550, %v2220, 0
        %v2332 = vsel %vm1550, %v2221, 0
        %v2335 = vsel %vm1550, %v2222, 0
        %v2338 = vsel %vm1550, %v2223, 0
        %v2341 = vsel %vm1550, %v2224, 0
        %v2344 = vsel %vm1550, %v2225, 0
        %v2347 = vsel %vm1550, %v2226, 0
        %v2350 = vsel %vm1550, %v2227, 0
        %v2353 = vsel %vm1550, %v2228, 0
        %v2356 = vsel %vm1550, %v2229, 0
        %v2359 = vsel %vm1550, %v2230, 0
        %v2362 = vsel %vm1550, %v2231, 0
        %v2365 = vsel %vm1550, %v2232, 0
        %v2368 = vsel %vm1550, %v2233, 0
        %v2371 = vsel %vm1550, %v2234, 0
        %v2374 = vsel %vm1550, %v2235, 0
        %v2377 = vsel %vm1550, %v2236, 0
        %v2380 = vsel %vm1550, %v2237, 0
        %v2383 = vsel %vm1550, %v2238, 0
        %v2386 = vsel %vm1550, %v2239, 0
        %v2389 = vsel %vm1550, %v2240, 0
        %v2392 = vsel %vm1550, %v2241, 0
        %v2395 = vsel %vm1550, %v2242, 0
        %v2398 = vsel %vm1550, %v2243, 0
        %v2401 = vsel %vm1550, %v2244, 0
        %v2404 = vsel %vm1550, %v2245, 0
        %v2407 = vsel %vm1550, %v2246, 0
        %v2410 = vsel %vm1550, %v2247, 0
        %v2413 = vsel %vm1550, %v2248, 0
        %v2416 = vsel %vm1550, %v2249, 0
        %v2419 = vsel %vm1550, %v2250, 0
        %v2422 = vsel %vm1550, %v2251, 0
        %v2425 = vsel %vm1550, %v2252, 0
        %v2428 = vsel %vm1550, %v2253, 0
        %v2431 = vsel %vm1550, %v2254, 0
        %v2434 = vsel %vm1550, %v2255, 0
        %v2437 = vsel %vm1550, %v2256, 0
        %v2440 = vsel %vm1550, %v2257, 0
        %v2443 = vsel %vm1550, %v2258, 0
        %v2446 = vsel %vm1550, %v2259, 0
        %v2449 = vsel %vm1550, %v2260, 0
        %v2452 = vsel %vm1550, %v2261, 0
        %v2455 = vsel %vm1550, %v2262, 0
        %v2458 = vsel %vm1550, %v2263, 0
        %2460 = vmatpush.bf16.xpose.msra.mxu0 %v2290
        %2461 = vmatpush.bf16.xpose.msra.mxu0 %v2287
        %2462 = vmatpush.bf16.xpose.msra.mxu0 %v2284
        %2463 = vmatpush.bf16.xpose.msra.mxu0 %v2281
        %2464 = vmatpush.bf16.xpose.msra.mxu0 %v2278
        %2465 = vmatpush.bf16.xpose.msra.mxu0 %v2275
        %2466 = vmatpush.bf16.xpose.msra.mxu0 %v2272
        %2467 = vmatpush.bf16.xpose.msra.mxu0 %v2269
        %2468 = vmatmul.bf16.gmra.mxu0 %v2266
        %v2469 = vpop.f32.mrf.mxu0
        %v2470 = vadd.f32 0.0, %v2469
        %v2471 = vpop.f32.mrf.mxu0
        %2472 = vdwg.mxu0
        %2473 = vmatpush.bf16.xpose.msra.mxu0 %v2314
        %2474 = vmatpush.bf16.xpose.msra.mxu0 %v2311
        %2475 = vmatpush.bf16.xpose.msra.mxu0 %v2308
        %2476 = vmatpush.bf16.xpose.msra.mxu0 %v2305
        %2477 = vmatpush.bf16.xpose.msra.mxu0 %v2302
        %2478 = vmatpush.bf16.xpose.msra.mxu0 %v2299
        %2479 = vmatpush.bf16.xpose.msra.mxu0 %v2296
        %2480 = vmatpush.bf16.xpose.msra.mxu0 %v2293
        %2481 = vmatmul.bf16.gmra.mxu0 %v2266
        %v2482 = vpop.f32.mrf.mxu0
        %v2483 = vadd.f32 0.0, %v2482
        %v2484 = vpop.f32.mrf.mxu0
        %2485 = vdwg.mxu0
        %2486 = vmatpush.bf16.xpose.msra.mxu0 %v2338
        %2487 = vmatpush.bf16.xpose.msra.mxu0 %v2335
        %2488 = vmatpush.bf16.xpose.msra.mxu0 %v2332
        %2489 = vmatpush.bf16.xpose.msra.mxu0 %v2329
        %2490 = vmatpush.bf16.xpose.msra.mxu0 %v2326
        %2491 = vmatpush.bf16.xpose.msra.mxu0 %v2323
        %2492 = vmatpush.bf16.xpose.msra.mxu0 %v2320
        %2493 = vmatpush.bf16.xpose.msra.mxu0 %v2317
        %2494 = vmatmul.bf16.gmra.mxu0 %v2266
        %v2495 = vpop.f32.mrf.mxu0
        %v2496 = vadd.f32 0.0, %v2495
        %v2497 = vpop.f32.mrf.mxu0
        %2498 = vdwg.mxu0
        %2499 = vmatpush.bf16.xpose.msra.mxu0 %v2362
        %2500 = vmatpush.bf16.xpose.msra.mxu0 %v2359
        %2501 = vmatpush.bf16.xpose.msra.mxu0 %v2356
        %2502 = vmatpush.bf16.xpose.msra.mxu0 %v2353
        %2503 = vmatpush.bf16.xpose.msra.mxu0 %v2350
        %2504 = vmatpush.bf16.xpose.msra.mxu0 %v2347
        %2505 = vmatpush.bf16.xpose.msra.mxu0 %v2344
        %2506 = vmatpush.bf16.xpose.msra.mxu0 %v2341
        %2507 = vmatmul.bf16.gmra.mxu0 %v2266
        %v2508 = vpop.f32.mrf.mxu0
        %v2509 = vadd.f32 0.0, %v2508
        %v2510 = vpop.f32.mrf.mxu0
        %2511 = vdwg.mxu0
        %2512 = vmatpush.bf16.xpose.msra.mxu0 %v2386
        %2513 = vmatpush.bf16.xpose.msra.mxu0 %v2383
        %2514 = vmatpush.bf16.xpose.msra.mxu0 %v2380
        %2515 = vmatpush.bf16.xpose.msra.mxu0 %v2377
        %2516 = vmatpush.bf16.xpose.msra.mxu0 %v2374
        %2517 = vmatpush.bf16.xpose.msra.mxu0 %v2371
        %2518 = vmatpush.bf16.xpose.msra.mxu0 %v2368
        %2519 = vmatpush.bf16.xpose.msra.mxu0 %v2365
        %2520 = vmatmul.bf16.gmra.mxu0 %v2266
        %v2521 = vpop.f32.mrf.mxu0
        %v2522 = vadd.f32 0.0, %v2521
        %v2523 = vpop.f32.mrf.mxu0
        %2524 = vdwg.mxu0
        %2525 = vmatpush.bf16.xpose.msra.mxu0 %v2410
        %2526 = vmatpush.bf16.xpose.msra.mxu0 %v2407
        %2527 = vmatpush.bf16.xpose.msra.mxu0 %v2404
        %2528 = vmatpush.bf16.xpose.msra.mxu0 %v2401
        %2529 = vmatpush.bf16.xpose.msra.mxu0 %v2398
        %2530 = vmatpush.bf16.xpose.msra.mxu0 %v2395
        %2531 = vmatpush.bf16.xpose.msra.mxu0 %v2392
        %2532 = vmatpush.bf16.xpose.msra.mxu0 %v2389
        %2533 = vmatmul.bf16.gmra.mxu0 %v2266
        %v2534 = vpop.f32.mrf.mxu0
        %v2535 = vadd.f32 0.0, %v2534
        %v2536 = vpop.f32.mrf.mxu0
        %2537 = vdwg.mxu0
        %2538 = vmatpush.bf16.xpose.msra.mxu0 %v2434
        %2539 = vmatpush.bf16.xpose.msra.mxu0 %v2431
        %2540 = vmatpush.bf16.xpose.msra.mxu0 %v2428
        %2541 = vmatpush.bf16.xpose.msra.mxu0 %v2425
        %2542 = vmatpush.bf16.xpose.msra.mxu0 %v2422
        %2543 = vmatpush.bf16.xpose.msra.mxu0 %v2419
        %2544 = vmatpush.bf16.xpose.msra.mxu0 %v2416
        %2545 = vmatpush.bf16.xpose.msra.mxu0 %v2413
        %2546 = vmatmul.bf16.gmra.mxu0 %v2266
        %v2547 = vpop.f32.mrf.mxu0
        %v2548 = vadd.f32 0.0, %v2547
        %v2549 = vpop.f32.mrf.mxu0
        %2550 = vdwg.mxu0
        %2551 = vmatpush.bf16.xpose.msra.mxu0 %v2458
        %2552 = vmatpush.bf16.xpose.msra.mxu0 %v2455
        %2553 = vmatpush.bf16.xpose.msra.mxu0 %v2452
        %2554 = vmatpush.bf16.xpose.msra.mxu0 %v2449
        %2555 = vmatpush.bf16.xpose.msra.mxu0 %v2446
        %2556 = vmatpush.bf16.xpose.msra.mxu0 %v2443
        %2557 = vmatpush.bf16.xpose.msra.mxu0 %v2440
        %2558 = vmatpush.bf16.xpose.msra.mxu0 %v2437
        %2559 = vmatmul.bf16.gmra.mxu0 %v2266
        %v2560 = vpop.f32.mrf.mxu0
        %v2561 = vadd.f32 0.0, %v2560
        %v2562 = vpop.f32.mrf.mxu0
        %2563 = vdwg.mxu0
        %v2564 = vld [vmem:[#allocation2] sm:$0x1]
        %2566 = vset.pattern.permute.xlu0 0
        %2567 = vperm.xlu0 %2566, %v2564
        %v2568 = vpop.permute.xlu0 %2567
        %v2570 = vperm.slane %v2568, 0
        %v2571 = vadd.f32 %v2470, %v2570
        %v2572 = vadd.f32 %v2483, %v2570
        %v2573 = vadd.f32 %v2496, %v2570
        %v2574 = vadd.f32 %v2509, %v2570
        %v2575 = vadd.f32 %v2522, %v2570
        %v2576 = vadd.f32 %v2535, %v2570
        %v2577 = vadd.f32 %v2548, %v2570
        %v2578 = vadd.f32 %v2561, %v2570
        %v2579 = vxor.u32 %v2571, 2147483648
        %v2580 = vxor.u32 %v2572, 2147483648
        %v2581 = vxor.u32 %v2573, 2147483648
        %v2582 = vxor.u32 %v2574, 2147483648
        %v2583 = vxor.u32 %v2575, 2147483648
        %v2584 = vxor.u32 %v2576, 2147483648
        %v2585 = vxor.u32 %v2577, 2147483648
        %v2586 = vxor.u32 %v2578, 2147483648
        %v2587 = vmul.f32 %v2579, 1.442695
        %v2588 = vpow.pop %v2587
        %v2589 = vmul.f32 %v2580, 1.442695
        %v2590 = vpow.pop %v2589
        %v2591 = vmul.f32 %v2581, 1.442695
        %v2592 = vpow.pop %v2591
        %v2593 = vmul.f32 %v2582, 1.442695
        %v2594 = vpow.pop %v2593
        %v2595 = vmul.f32 %v2583, 1.442695
        %v2596 = vpow.pop %v2595
        %v2597 = vmul.f32 %v2584, 1.442695
        %v2598 = vpow.pop %v2597
        %v2599 = vmul.f32 %v2585, 1.442695
        %v2600 = vpow.pop %v2599
        %v2601 = vmul.f32 %v2586, 1.442695
        %v2602 = vpow.pop %v2601
        %v2603 = vadd.f32 %v2588, 1.0
        %v2604 = vadd.f32 %v2590, 1.0
        %v2605 = vadd.f32 %v2592, 1.0
        %v2606 = vadd.f32 %v2594, 1.0
        %v2607 = vadd.f32 %v2596, 1.0
        %v2608 = vadd.f32 %v2598, 1.0
        %v2609 = vadd.f32 %v2600, 1.0
        %v2610 = vadd.f32 %v2602, 1.0
        %v2611 = vrcp.pop %v2603
        %v2612 = vmul.f32 %v2603, %v2611
        %v2613 = vsub.f32 1.0, %v2612
        %v2614 = vmul.f32 %v2611, %v2613
        %v2615 = vadd.f32 %v2611, %v2614
        %vm2616 = vweird.f32 %v2603
        %vm2617 = vweird.f32 %v2611
        %vm2618 = vmor %vm2616, %vm2617
        %v2619 = vsel %vm2618, %v2611, %v2615
        %v2620 = vand.u32 2147483647, %v2603
        %vm2621 = vcmp.eq.f32.partialorder %v2620, 8.507059e+37
        %v2622 = vand.u32 %v2603, 2147483648
        %v2623 = vor.u32 1.1754944e-38, %v2622
        %v2624 = vsel %vm2621, %v2623, %v2619
        %v2625 = vmul.f32 1.0, %v2624
        %v2626 = vrcp.pop %v2604
        %v2627 = vmul.f32 %v2604, %v2626
        %v2628 = vsub.f32 1.0, %v2627
        %v2629 = vmul.f32 %v2626, %v2628
        %v2630 = vadd.f32 %v2626, %v2629
        %vm2631 = vweird.f32 %v2604
        %vm2632 = vweird.f32 %v2626
        %vm2633 = vmor %vm2631, %vm2632
        %v2634 = vsel %vm2633, %v2626, %v2630
        %v2635 = vand.u32 2147483647, %v2604
        %vm2636 = vcmp.eq.f32.partialorder %v2635, 8.507059e+37
        %v2637 = vand.u32 %v2604, 2147483648
        %v2638 = vor.u32 1.1754944e-38, %v2637
        %v2639 = vsel %vm2636, %v2638, %v2634
        %v2640 = vmul.f32 1.0, %v2639
        %v2641 = vrcp.pop %v2605
        %v2642 = vmul.f32 %v2605, %v2641
        %v2643 = vsub.f32 1.0, %v2642
        %v2644 = vmul.f32 %v2641, %v2643
        %v2645 = vadd.f32 %v2641, %v2644
        %vm2646 = vweird.f32 %v2605
        %vm2647 = vweird.f32 %v2641
        %vm2648 = vmor %vm2646, %vm2647
        %v2649 = vsel %vm2648, %v2641, %v2645
        %v2650 = vand.u32 2147483647, %v2605
        %vm2651 = vcmp.eq.f32.partialorder %v2650, 8.507059e+37
        %v2652 = vand.u32 %v2605, 2147483648
        %v2653 = vor.u32 1.1754944e-38, %v2652
        %v2654 = vsel %vm2651, %v2653, %v2649
        %v2655 = vmul.f32 1.0, %v2654
        %v2656 = vrcp.pop %v2606
        %v2657 = vmul.f32 %v2606, %v2656
        %v2658 = vsub.f32 1.0, %v2657
        %v2659 = vmul.f32 %v2656, %v2658
        %v2660 = vadd.f32 %v2656, %v2659
        %vm2661 = vweird.f32 %v2606
        %vm2662 = vweird.f32 %v2656
        %vm2663 = vmor %vm2661, %vm2662
        %v2664 = vsel %vm2663, %v2656, %v2660
        %v2665 = vand.u32 2147483647, %v2606
        %vm2666 = vcmp.eq.f32.partialorder %v2665, 8.507059e+37
        %v2667 = vand.u32 %v2606, 2147483648
        %v2668 = vor.u32 1.1754944e-38, %v2667
        %v2669 = vsel %vm2666, %v2668, %v2664
        %v2670 = vmul.f32 1.0, %v2669
        %v2671 = vrcp.pop %v2607
        %v2672 = vmul.f32 %v2607, %v2671
        %v2673 = vsub.f32 1.0, %v2672
        %v2674 = vmul.f32 %v2671, %v2673
        %v2675 = vadd.f32 %v2671, %v2674
        %vm2676 = vweird.f32 %v2607
        %vm2677 = vweird.f32 %v2671
        %vm2678 = vmor %vm2676, %vm2677
        %v2679 = vsel %vm2678, %v2671, %v2675
        %v2680 = vand.u32 2147483647, %v2607
        %vm2681 = vcmp.eq.f32.partialorder %v2680, 8.507059e+37
        %v2682 = vand.u32 %v2607, 2147483648
        %v2683 = vor.u32 1.1754944e-38, %v2682
        %v2684 = vsel %vm2681, %v2683, %v2679
        %v2685 = vmul.f32 1.0, %v2684
        %v2686 = vrcp.pop %v2608
        %v2687 = vmul.f32 %v2608, %v2686
        %v2688 = vsub.f32 1.0, %v2687
        %v2689 = vmul.f32 %v2686, %v2688
        %v2690 = vadd.f32 %v2686, %v2689
        %vm2691 = vweird.f32 %v2608
        %vm2692 = vweird.f32 %v2686
        %vm2693 = vmor %vm2691, %vm2692
        %v2694 = vsel %vm2693, %v2686, %v2690
        %v2695 = vand.u32 2147483647, %v2608
        %vm2696 = vcmp.eq.f32.partialorder %v2695, 8.507059e+37
        %v2697 = vand.u32 %v2608, 2147483648
        %v2698 = vor.u32 1.1754944e-38, %v2697
        %v2699 = vsel %vm2696, %v2698, %v2694
        %v2700 = vmul.f32 1.0, %v2699
        %v2701 = vrcp.pop %v2609
        %v2702 = vmul.f32 %v2609, %v2701
        %v2703 = vsub.f32 1.0, %v2702
        %v2704 = vmul.f32 %v2701, %v2703
        %v2705 = vadd.f32 %v2701, %v2704
        %vm2706 = vweird.f32 %v2609
        %vm2707 = vweird.f32 %v2701
        %vm2708 = vmor %vm2706, %vm2707
        %v2709 = vsel %vm2708, %v2701, %v2705
        %v2710 = vand.u32 2147483647, %v2609
        %vm2711 = vcmp.eq.f32.partialorder %v2710, 8.507059e+37
        %v2712 = vand.u32 %v2609, 2147483648
        %v2713 = vor.u32 1.1754944e-38, %v2712
        %v2714 = vsel %vm2711, %v2713, %v2709
        %v2715 = vmul.f32 1.0, %v2714
        %v2716 = vrcp.pop %v2610
        %v2717 = vmul.f32 %v2610, %v2716
        %v2718 = vsub.f32 1.0, %v2717
        %v2719 = vmul.f32 %v2716, %v2718
        %v2720 = vadd.f32 %v2716, %v2719
        %vm2721 = vweird.f32 %v2610
        %vm2722 = vweird.f32 %v2716
        %vm2723 = vmor %vm2721, %vm2722
        %v2724 = vsel %vm2723, %v2716, %v2720
        %v2725 = vand.u32 2147483647, %v2610
        %vm2726 = vcmp.eq.f32.partialorder %v2725, 8.507059e+37
        %v2727 = vand.u32 %v2610, 2147483648
        %v2728 = vor.u32 1.1754944e-38, %v2727
        %v2729 = vsel %vm2726, %v2728, %v2724
        %v2730 = vmul.f32 1.0, %v2729
        %v2739 = vrot.slane %v2640, 7
        %v2740 = vrot.slane %v2655, 6
        %v2741 = vrot.slane %v2670, 5
        %v2742 = vrot.slane %v2685, 4
        %v2743 = vrot.slane %v2700, 3
        %v2744 = vrot.slane %v2715, 2
        %v2745 = vrot.slane %v2730, 1
        %vm2746 = vcmask 1040384
        %v2747 = vsel %vm2746, %v2625, %v2739
        %vm2748 = vcmask 1042434
        %v2749 = vsel %vm2748, %v2740, %v2741
        %vm2750 = vcmask 1041408
        %v2751 = vsel %vm2750, %v2747, %v2749
        %vm2752 = vcmask 1044484
        %v2753 = vsel %vm2752, %v2742, %v2743
        %vm2754 = vcmask 1046534
        %v2755 = vsel %vm2754, %v2744, %v2745
        %vm2756 = vcmask 1045508
        %v2757 = vsel %vm2756, %v2753, %v2755
        %vm2758 = vcmask 1043456
        %v2759 = vsel %vm2758, %v2751, %v2757
        %2761 = vst [vmem:[%s317] sm:$0xff] %v2759
        %s2762 = sand.u32 %s210, 1
        %s2763 = scalar_lea.sflag [#allocation4], %s2762
        %s2764 = sand.u32 %s210, 1
        %s2765 = smul.addr %s2764, 8
        %s2766 = scalar_lea.vmem [#allocation3], %s2765
        // Predicated region
        $region53: #{tpu_custom_call.1} parent=51 // pred_check
          %p2767 = pneg %p220
        $region54: #{tpu_custom_call.1} parent=51 // pred_check_branch
          %2769 = sbr.rel (%p2767) target = $region56
        $region55: #{tpu_custom_call.1} parent=51 // pred_region
          %s2770 = smul.u32 8, %s24
          %2772 = vsyncadd %s2763, 0
          %s2773 = scalar_lea.hbm %s8, %s2770
          %s2775 = sshll.u32 %s2766, 4
          %s2776 = int_to_ptr.vmem [resolvable:$true] %s2775
          %s2777 = sshll.u32 %s2773, 4
          %s2778 = int_to_ptr.hbm [resolvable:$true] %s2777
          %2780 = dma.vmem_to_hbm [thread:$0]  %s2776, 128, %s2778, %s2763
        $region56: #{tpu_custom_call.1} parent=51 // pred_fallthru
          _
      $region52: #{tpu_custom_call.1} parent=5 // pred_fallthru
        _
      %p2781 = scmp.le.s32.totalorder 2, %s19
      // Predicated region
      $region57: #{tpu_custom_call.1} parent=5 // pred_check
        %p2782 = pneg %p2781
      $region58: #{tpu_custom_call.1} parent=5 // pred_check_branch
        %2784 = sbr.rel (%p2782) target = $region60
      $region59: #{tpu_custom_call.1} parent=5 // pred_region
        %s2785 = ssub.s32 %s19, 2
        // Predicated region
        $region61: #{tpu_custom_call.1} parent=59 // pred_check
          %p2786 = pneg %p226
        $region62: #{tpu_custom_call.1} parent=59 // pred_check_branch
          %2788 = sbr.rel (%p2786) target = $region64
        $region63: #{tpu_custom_call.1} parent=59 // pred_region
          %s2789 = sand.u32 %s211, 1
          %s2790 = scalar_lea.sflag [#allocation4], %s2789
          %s2791 = sand.u32 %s211, 1
          %s2792 = smul.addr %s2791, 8
          %s2793 = scalar_lea.vmem [#allocation3], %s2792
          %2795 = dma.done %s2790, 128
        $region64: #{tpu_custom_call.1} parent=59 // pred_fallthru
          _
      $region60: #{tpu_custom_call.1} parent=5 // pred_fallthru
        _
    $region6: #{tpu_custom_call.1} parent=1 // loop_footer
      %s23 = sadd.s32 1, %s19
    $region7: #{tpu_custom_call.1} parent=1 // loop_footer_branch
      %18 = sbr.rel target = $region3
    $region8: #{tpu_custom_call.1} parent=1 // loop_exit
      _
    %2796 = vsyncpa [#allocation4], 1
    %s2797 = scalar_lea.sflag [#allocation4], 1
    %2798 = vsyncpa %s2797, 1

</llo_original>
